<compile_context>
chip_gen: v5e
topology: v5e:2x2
jax: 0.10.0
libtpu: 0.0.40
codegen_flags: <defaults>
</compile_context>

<pallas_src>
import functools

import jax
import jax.numpy as jnp
from jax.experimental import pallas as pl
from jax.experimental.pallas import tpu as pltpu


def _embed_resident_kernel(TI, idx_ref, w_ref, out_ref):
    """Gather TI rows from the VMEM-resident table into a dense (TI, D) tile.

    idx_ref: SMEM scalar-prefetch ref, int32[N_pad] (flattened token ids).
    w_ref:   (V, D) table block, resident in VMEM (constant block index).
    out_ref: (TI, D) slot of the flattened output (auto-pipelined by Pallas).
    """
    base = pl.program_id(0) * TI
    for r in range(TI):
        row = idx_ref[base + r]
        # Dynamic (1, D) read from the resident table; static-offset store.
        out_ref[pl.ds(r, 1), :] = w_ref[pl.ds(row, 1), :].astype(out_ref.dtype)


def _embed_gather_kernel(TI, idx_ref, w_hbm, out_ref, rows_vmem, sems):
    """HBM row-gather with cross-step double buffering.

    idx_ref:   SMEM scalar-prefetch ref, int32[N_pad].
    w_hbm:     full weight table left in HBM (memory_space=pl.ANY).
    out_ref:   (TI, D) output slot (auto-pipelined).
    rows_vmem: (2, TI, D) VMEM staging buffer (slot = step & 1).
    sems:      (2,) DMA semaphores, one shared semaphore per buffer slot.
    """
    i = pl.program_id(0)
    slot = i % 2

    def issue(step, slot_):
        base = step * TI
        for r in range(TI):
            row = idx_ref[base + r]
            pltpu.make_async_copy(
                w_hbm.at[pl.ds(row, 1), :],
                rows_vmem.at[slot_, pl.ds(r, 1), :],
                sems.at[slot_],
            ).start()

    def drain(step, slot_):
        base = step * TI
        for r in range(TI):
            row = idx_ref[base + r]          # real source slice (no dummy src)
            pltpu.make_async_copy(
                w_hbm.at[pl.ds(row, 1), :],
                rows_vmem.at[slot_, pl.ds(r, 1), :],
                sems.at[slot_],
            ).wait()

    # Prime the pipeline: the first step issues its own tile's copies.
    @pl.when(i == 0)
    def _():
        issue(i, slot)

    # Prefetch the next tile into the other slot while this one drains.
    @pl.when(i + 1 < pl.num_programs(0))
    def _():
        issue(i + 1, 1 - slot)

    # Drain the current slot, then a single cast + dense (TI, D) store.
    drain(i, slot)
    out_ref[...] = rows_vmem[slot].astype(out_ref.dtype)


def sparse_embedding_forward(weight: jax.Array,
                             indices: jax.Array,
                             out_dtype=jnp.float32,
                             rows_per_step: int = 128,
                             force_hbm_gather: bool = False) -> jax.Array:
    """Pallas equivalent of SparseEmbedding.forward (not_ddp path)."""
    V, D = weight.shape
    # PyTorch raises on out-of-range ids; Pallas accesses are not bounds-checked
    # the same way, so clamp to keep every access inside the table.
    idx_flat = jnp.clip(indices.reshape(-1).astype(jnp.int32), 0, V - 1)
    N = idx_flat.shape[0]

    w_bpe = jnp.dtype(weight.dtype).itemsize
    o_bpe = jnp.dtype(out_dtype).itemsize

    # Round TI up to the output dtype's sublane multiple so the (TI, D) output
    # block stays tile-aligned and stores stay unmasked (8/16/32 rows for
    # 4/2/1-byte output elements).
    sub = max(8, 32 // o_bpe)
    TI = max(sub, ((int(rows_per_step) + sub - 1) // sub) * sub)

    n_steps = pl.cdiv(N, TI)
    n_pad = n_steps * TI
    if n_pad != N:
        # Pad with a valid index (0); padded rows are sliced off afterwards.
        idx_flat = jnp.concatenate(
            [idx_flat, jnp.zeros((n_pad - N,), jnp.int32)])

    # Per-generation VMEM budget (v5e/v6e: 128 MiB, v7x: 64 MiB per core).
    try:
        vmem_cap = int(pltpu.get_tpu_info().vmem_capacity_bytes)
    except Exception:
        vmem_cap = 64 * 1024 * 1024          # conservative (v7x) fallback
    vmem_budget = min((vmem_cap * 3) // 4, 100 * 1024 * 1024)

    table_bytes = V * D * w_bpe
    out_blk_bytes = 2 * TI * D * o_bpe       # double-buffered output block
    headroom = 4 * 1024 * 1024
    resident_ok = (not force_hbm_gather) and (
        2 * table_bytes + out_blk_bytes + headroom <= vmem_budget)

    if resident_ok:
        # ---- VMEM-resident table fast path ---------------------------------
        cost = pl.CostEstimate(
            flops=0, transcendentals=0,
            bytes_accessed=int(table_bytes + n_pad * D * o_bpe + n_pad * 4))
        grid_spec = pltpu.PrefetchScalarGridSpec(
            num_scalar_prefetch=1,           # indices land in SMEM pre-grid
            grid=(n_steps,),
            in_specs=[
                # Constant block index: the table is DMA'd into VMEM once and
                # stays resident across all grid steps.
                pl.BlockSpec((V, D), lambda i, idx: (0, 0)),
            ],
            out_specs=pl.BlockSpec((TI, D), lambda i, idx: (i, 0)),
        )
        out_flat = pl.pallas_call(
            functools.partial(_embed_resident_kernel, TI),
            out_shape=jax.ShapeDtypeStruct((n_pad, D), out_dtype),
            grid_spec=grid_spec,
            compiler_params=pltpu.CompilerParams(
                # Fully independent steps: let v7x shard across its two cores.
                dimension_semantics=("parallel",),
                vmem_limit_bytes=vmem_budget),
            cost_estimate=cost,
        )(idx_flat, weight)
    else:
        # ---- HBM row-DMA gather path (table too large for VMEM) ------------
        cost = pl.CostEstimate(
            flops=0, transcendentals=0,
            bytes_accessed=int(n_pad * D * (w_bpe + o_bpe) + n_pad * 4))
        grid_spec = pltpu.PrefetchScalarGridSpec(
            num_scalar_prefetch=1,
            grid=(n_steps,),
            in_specs=[
                pl.BlockSpec(memory_space=pl.ANY),   # table stays in HBM
            ],
            out_specs=pl.BlockSpec((TI, D), lambda i, idx: (i, 0)),
            scratch_shapes=[
                pltpu.VMEM((2, TI, D), weight.dtype),  # double-buffered staging
                pltpu.SemaphoreType.DMA((2,)),         # one shared sem per slot
            ],
        )
        out_flat = pl.pallas_call(
            functools.partial(_embed_gather_kernel, TI),
            out_shape=jax.ShapeDtypeStruct((n_pad, D), out_dtype),
            grid_spec=grid_spec,
            compiler_params=pltpu.CompilerParams(
                # Prefetch state (slot priming / next-tile DMAs) is carried
                # across grid steps, so the axis must run sequentially.
                dimension_semantics=("arbitrary",),
                vmem_limit_bytes=vmem_budget),
            cost_estimate=cost,
        )(idx_flat, weight)

    return out_flat[:N].reshape(tuple(indices.shape) + (D,))


if __name__ == "__main__":
    # Deterministic parameter init matching SparseEmbedding.__init__:
    #   weight ~ Normal(0, std=0.01), shape (num_embeddings, embedding_dim)
    num_embeddings = 64
    embedding_dim = 128
    std = 0.01

    key = jax.random.PRNGKey(0)
    wkey, ikey, jkey = jax.random.split(key, 3)
    weight = std * jax.random.normal(
        wkey, (num_embeddings, embedding_dim), dtype=jnp.float32)

    # --- VMEM-resident-table fast path (64 x 128 f32 = 32 KiB table) --------
    indices = jax.random.randint(
        ikey, (2, 8), 0, num_embeddings, dtype=jnp.int32)
    ref_f32 = weight[indices].astype(jnp.float32)

    out = jax.block_until_ready(
        sparse_embedding_forward(weight, indices, out_dtype=jnp.float32))
    assert out.shape == indices.shape + (embedding_dim,), out.shape
    assert out.dtype == jnp.float32
    assert jnp.allclose(out, ref_f32), "resident path mismatch (f32)"

    out_bf16 = jax.block_until_ready(
        sparse_embedding_forward(weight, indices, out_dtype=jnp.bfloat16))
    assert out_bf16.dtype == jnp.bfloat16
    assert jnp.array_equal(out_bf16, weight[indices].astype(jnp.bfloat16)), \
        "resident path mismatch (bf16)"

    # --- HBM row-DMA gather path (forced; used for tables too big for VMEM) -
    # Enough tokens for several grid steps so priming, cross-step prefetch and
    # the slot flip are all exercised on hardware.
    indices_big = jax.random.randint(
        jkey, (4, 96), 0, num_embeddings, dtype=jnp.int32)
    ref_big = weight[indices_big].astype(jnp.float32)

    out_hbm = jax.block_until_ready(
        sparse_embedding_forward(weight, indices_big, out_dtype=jnp.float32,
                                 force_hbm_gather=True))
    assert out_hbm.shape == indices_big.shape + (embedding_dim,)
    assert jnp.allclose(out_hbm, ref_big), "HBM gather path mismatch (f32)"

    out_hbm_bf16 = jax.block_until_ready(
        sparse_embedding_forward(weight, indices_big, out_dtype=jnp.bfloat16,
                                 force_hbm_gather=True))
    assert jnp.array_equal(
        out_hbm_bf16, weight[indices_big].astype(jnp.bfloat16)), \
        "HBM gather path mismatch (bf16)"

    print("KERNEL_OK")
</pallas_src>

<mosaic_0001>
module attributes {stable_mosaic.version = 11 : i64} {
  func.func @_embed_resident_kernel(%arg0: i32, %arg1: memref<128xi32, #tpu.memory_space<smem>>, %arg2: memref<64x128xf32, #tpu.memory_space<vmem>>, %arg3: memref<128x128xf32, #tpu.memory_space<vmem>>) attributes {dimension_semantics = [#tpu.dimension_semantics<parallel>], iteration_bounds = array<i64: 1>, scalar_prefetch = 1 : i64, scratch_operands = 0 : i64, tpu.core_type = #tpu.core_type<tc>, window_params = [{pipeline_mode = #tpu.pipeline_mode<synchronous>, transform_indices = @transform_0, window_bounds = array<i64: 64, 128>}, {transform_indices = @transform_1, window_bounds = array<i64: 128, 128>}]} {
    %c128_i32 = arith.constant 128 : i32
    %0 = arith.muli %arg0, %c128_i32 : i32
    %c0_i32 = arith.constant 0 : i32
    %1 = arith.addi %0, %c0_i32 : i32
    %2 = arith.index_cast %1 : i32 to index
    %3 = memref.load %arg1[%2] : memref<128xi32, #tpu.memory_space<smem>>
    %4 = arith.index_cast %3 : i32 to index
    %c0 = arith.constant 0 : index
    %5 = vector.load %arg2[%4, %c0] : memref<64x128xf32, #tpu.memory_space<vmem>>, vector<1x128xf32>
    %c0_0 = arith.constant 0 : index
    %c0_1 = arith.constant 0 : index
    %6 = vector.load %arg3[%c0_0, %c0_1] : memref<128x128xf32, #tpu.memory_space<vmem>>, vector<1x128xf32>
    tpu.vector_store %arg3[%c0_0, %c0_1], %5 {strides = array<i32>} : memref<128x128xf32, #tpu.memory_space<vmem>>, vector<1x128xf32>,
    %c1_i32 = arith.constant 1 : i32
    %7 = arith.addi %0, %c1_i32 : i32
    %8 = arith.index_cast %7 : i32 to index
    %9 = memref.load %arg1[%8] : memref<128xi32, #tpu.memory_space<smem>>
    %10 = arith.index_cast %9 : i32 to index
    %c0_2 = arith.constant 0 : index
    %11 = vector.load %arg2[%10, %c0_2] : memref<64x128xf32, #tpu.memory_space<vmem>>, vector<1x128xf32>
    %c1 = arith.constant 1 : index
    %c0_3 = arith.constant 0 : index
    %12 = vector.load %arg3[%c1, %c0_3] : memref<128x128xf32, #tpu.memory_space<vmem>>, vector<1x128xf32>
    tpu.vector_store %arg3[%c1, %c0_3], %11 {strides = array<i32>} : memref<128x128xf32, #tpu.memory_space<vmem>>, vector<1x128xf32>,
    %c2_i32 = arith.constant 2 : i32
    %13 = arith.addi %0, %c2_i32 : i32
    %14 = arith.index_cast %13 : i32 to index
    %15 = memref.load %arg1[%14] : memref<128xi32, #tpu.memory_space<smem>>
    %16 = arith.index_cast %15 : i32 to index
    %c0_4 = arith.constant 0 : index
    %17 = vector.load %arg2[%16, %c0_4] : memref<64x128xf32, #tpu.memory_space<vmem>>, vector<1x128xf32>
    %c2 = arith.constant 2 : index
    %c0_5 = arith.constant 0 : index
    %18 = vector.load %arg3[%c2, %c0_5] : memref<128x128xf32, #tpu.memory_space<vmem>>, vector<1x128xf32>
    tpu.vector_store %arg3[%c2, %c0_5], %17 {strides = array<i32>} : memref<128x128xf32, #tpu.memory_space<vmem>>, vector<1x128xf32>,
    %c3_i32 = arith.constant 3 : i32
    %19 = arith.addi %0, %c3_i32 : i32
    %20 = arith.index_cast %19 : i32 to index
    %21 = memref.load %arg1[%20] : memref<128xi32, #tpu.memory_space<smem>>
    %22 = arith.index_cast %21 : i32 to index
    %c0_6 = arith.constant 0 : index
    %23 = vector.load %arg2[%22, %c0_6] : memref<64x128xf32, #tpu.memory_space<vmem>>, vector<1x128xf32>
    %c3 = arith.constant 3 : index
    %c0_7 = arith.constant 0 : index
    %24 = vector.load %arg3[%c3, %c0_7] : memref<128x128xf32, #tpu.memory_space<vmem>>, vector<1x128xf32>
    tpu.vector_store %arg3[%c3, %c0_7], %23 {strides = array<i32>} : memref<128x128xf32, #tpu.memory_space<vmem>>, vector<1x128xf32>,
    %c4_i32 = arith.constant 4 : i32
    %25 = arith.addi %0, %c4_i32 : i32
    %26 = arith.index_cast %25 : i32 to index
    %27 = memref.load %arg1[%26] : memref<128xi32, #tpu.memory_space<smem>>
    %28 = arith.index_cast %27 : i32 to index
    %c0_8 = arith.constant 0 : index
    %29 = vector.load %arg2[%28, %c0_8] : memref<64x128xf32, #tpu.memory_space<vmem>>, vector<1x128xf32>
    %c4 = arith.constant 4 : index
    %c0_9 = arith.constant 0 : index
    %30 = vector.load %arg3[%c4, %c0_9] : memref<128x128xf32, #tpu.memory_space<vmem>>, vector<1x128xf32>
    tpu.vector_store %arg3[%c4, %c0_9], %29 {strides = array<i32>} : memref<128x128xf32, #tpu.memory_space<vmem>>, vector<1x128xf32>,
    %c5_i32 = arith.constant 5 : i32
    %31 = arith.addi %0, %c5_i32 : i32
    %32 = arith.index_cast %31 : i32 to index
    %33 = memref.load %arg1[%32] : memref<128xi32, #tpu.memory_space<smem>>
    %34 = arith.index_cast %33 : i32 to index
    %c0_10 = arith.constant 0 : index
    %35 = vector.load %arg2[%34, %c0_10] : memref<64x128xf32, #tpu.memory_space<vmem>>, vector<1x128xf32>
    %c5 = arith.constant 5 : index
    %c0_11 = arith.constant 0 : index
    %36 = vector.load %arg3[%c5, %c0_11] : memref<128x128xf32, #tpu.memory_space<vmem>>, vector<1x128xf32>
    tpu.vector_store %arg3[%c5, %c0_11], %35 {strides = array<i32>} : memref<128x128xf32, #tpu.memory_space<vmem>>, vector<1x128xf32>,
    %c6_i32 = arith.constant 6 : i32
    %37 = arith.addi %0, %c6_i32 : i32
    %38 = arith.index_cast %37 : i32 to index
    %39 = memref.load %arg1[%38] : memref<128xi32, #tpu.memory_space<smem>>
    %40 = arith.index_cast %39 : i32 to index
    %c0_12 = arith.constant 0 : index
    %41 = vector.load %arg2[%40, %c0_12] : memref<64x128xf32, #tpu.memory_space<vmem>>, vector<1x128xf32>
    %c6 = arith.constant 6 : index
    %c0_13 = arith.constant 0 : index
    %42 = vector.load %arg3[%c6, %c0_13] : memref<128x128xf32, #tpu.memory_space<vmem>>, vector<1x128xf32>
    tpu.vector_store %arg3[%c6, %c0_13], %41 {strides = array<i32>} : memref<128x128xf32, #tpu.memory_space<vmem>>, vector<1x128xf32>,
    %c7_i32 = arith.constant 7 : i32
    %43 = arith.addi %0, %c7_i32 : i32
    %44 = arith.index_cast %43 : i32 to index
    %45 = memref.load %arg1[%44] : memref<128xi32, #tpu.memory_space<smem>>
    %46 = arith.index_cast %45 : i32 to index
    %c0_14 = arith.constant 0 : index
    %47 = vector.load %arg2[%46, %c0_14] : memref<64x128xf32, #tpu.memory_space<vmem>>, vector<1x128xf32>
    %c7 = arith.constant 7 : index
    %c0_15 = arith.constant 0 : index
    %48 = vector.load %arg3[%c7, %c0_15] : memref<128x128xf32, #tpu.memory_space<vmem>>, vector<1x128xf32>
    tpu.vector_store %arg3[%c7, %c0_15], %47 {strides = array<i32>} : memref<128x128xf32, #tpu.memory_space<vmem>>, vector<1x128xf32>,
    %c8_i32 = arith.constant 8 : i32
    %49 = arith.addi %0, %c8_i32 : i32
    %50 = arith.index_cast %49 : i32 to index
    %51 = memref.load %arg1[%50] : memref<128xi32, #tpu.memory_space<smem>>
    %52 = arith.index_cast %51 : i32 to index
    %c0_16 = arith.constant 0 : index
    %53 = vector.load %arg2[%52, %c0_16] : memref<64x128xf32, #tpu.memory_space<vmem>>, vector<1x128xf32>
    %c8 = arith.constant 8 : index
    %c0_17 = arith.constant 0 : index
    %54 = vector.load %arg3[%c8, %c0_17] : memref<128x128xf32, #tpu.memory_space<vmem>>, vector<1x128xf32>
    tpu.vector_store %arg3[%c8, %c0_17], %53 {strides = array<i32>} : memref<128x128xf32, #tpu.memory_space<vmem>>, vector<1x128xf32>,
    %c9_i32 = arith.constant 9 : i32
    %55 = arith.addi %0, %c9_i32 : i32
    %56 = arith.index_cast %55 : i32 to index
    %57 = memref.load %arg1[%56] : memref<128xi32, #tpu.memory_space<smem>>
    %58 = arith.index_cast %57 : i32 to index
    %c0_18 = arith.constant 0 : index
    %59 = vector.load %arg2[%58, %c0_18] : memref<64x128xf32, #tpu.memory_space<vmem>>, vector<1x128xf32>
    %c9 = arith.constant 9 : index
    %c0_19 = arith.constant 0 : index
    %60 = vector.load %arg3[%c9, %c0_19] : memref<128x128xf32, #tpu.memory_space<vmem>>, vector<1x128xf32>
    tpu.vector_store %arg3[%c9, %c0_19], %59 {strides = array<i32>} : memref<128x128xf32, #tpu.memory_space<vmem>>, vector<1x128xf32>,
    %c10_i32 = arith.constant 10 : i32
    %61 = arith.addi %0, %c10_i32 : i32
    %62 = arith.index_cast %61 : i32 to index
    %63 = memref.load %arg1[%62] : memref<128xi32, #tpu.memory_space<smem>>
    %64 = arith.index_cast %63 : i32 to index
    %c0_20 = arith.constant 0 : index
    %65 = vector.load %arg2[%64, %c0_20] : memref<64x128xf32, #tpu.memory_space<vmem>>, vector<1x128xf32>
    %c10 = arith.constant 10 : index
    %c0_21 = arith.constant 0 : index
    %66 = vector.load %arg3[%c10, %c0_21] : memref<128x128xf32, #tpu.memory_space<vmem>>, vector<1x128xf32>
    tpu.vector_store %arg3[%c10, %c0_21], %65 {strides = array<i32>} : memref<128x128xf32, #tpu.memory_space<vmem>>, vector<1x128xf32>,
    %c11_i32 = arith.constant 11 : i32
    %67 = arith.addi %0, %c11_i32 : i32
    %68 = arith.index_cast %67 : i32 to index
    %69 = memref.load %arg1[%68] : memref<128xi32, #tpu.memory_space<smem>>
    %70 = arith.index_cast %69 : i32 to index
    %c0_22 = arith.constant 0 : index
    %71 = vector.load %arg2[%70, %c0_22] : memref<64x128xf32, #tpu.memory_space<vmem>>, vector<1x128xf32>
    %c11 = arith.constant 11 : index
    %c0_23 = arith.constant 0 : index
    %72 = vector.load %arg3[%c11, %c0_23] : memref<128x128xf32, #tpu.memory_space<vmem>>, vector<1x128xf32>
    tpu.vector_store %arg3[%c11, %c0_23], %71 {strides = array<i32>} : memref<128x128xf32, #tpu.memory_space<vmem>>, vector<1x128xf32>,
    %c12_i32 = arith.constant 12 : i32
    %73 = arith.addi %0, %c12_i32 : i32
    %74 = arith.index_cast %73 : i32 to index
    %75 = memref.load %arg1[%74] : memref<128xi32, #tpu.memory_space<smem>>
    %76 = arith.index_cast %75 : i32 to index
    %c0_24 = arith.constant 0 : index
    %77 = vector.load %arg2[%76, %c0_24] : memref<64x128xf32, #tpu.memory_space<vmem>>, vector<1x128xf32>
    %c12 = arith.constant 12 : index
    %c0_25 = arith.constant 0 : index
    %78 = vector.load %arg3[%c12, %c0_25] : memref<128x128xf32, #tpu.memory_space<vmem>>, vector<1x128xf32>
    tpu.vector_store %arg3[%c12, %c0_25], %77 {strides = array<i32>} : memref<128x128xf32, #tpu.memory_space<vmem>>, vector<1x128xf32>,
    %c13_i32 = arith.constant 13 : i32
    %79 = arith.addi %0, %c13_i32 : i32
    %80 = arith.index_cast %79 : i32 to index
    %81 = memref.load %arg1[%80] : memref<128xi32, #tpu.memory_space<smem>>
    %82 = arith.index_cast %81 : i32 to index
    %c0_26 = arith.constant 0 : index
    %83 = vector.load %arg2[%82, %c0_26] : memref<64x128xf32, #tpu.memory_space<vmem>>, vector<1x128xf32>
    %c13 = arith.constant 13 : index
    %c0_27 = arith.constant 0 : index
    %84 = vector.load %arg3[%c13, %c0_27] : memref<128x128xf32, #tpu.memory_space<vmem>>, vector<1x128xf32>
    tpu.vector_store %arg3[%c13, %c0_27], %83 {strides = array<i32>} : memref<128x128xf32, #tpu.memory_space<vmem>>, vector<1x128xf32>,
    %c14_i32 = arith.constant 14 : i32
    %85 = arith.addi %0, %c14_i32 : i32
    %86 = arith.index_cast %85 : i32 to index
    %87 = memref.load %arg1[%86] : memref<128xi32, #tpu.memory_space<smem>>
    %88 = arith.index_cast %87 : i32 to index
    %c0_28 = arith.constant 0 : index
    %89 = vector.load %arg2[%88, %c0_28] : memref<64x128xf32, #tpu.memory_space<vmem>>, vector<1x128xf32>
    %c14 = arith.constant 14 : index
    %c0_29 = arith.constant 0 : index
    %90 = vector.load %arg3[%c14, %c0_29] : memref<128x128xf32, #tpu.memory_space<vmem>>, vector<1x128xf32>
    tpu.vector_store %arg3[%c14, %c0_29], %89 {strides = array<i32>} : memref<128x128xf32, #tpu.memory_space<vmem>>, vector<1x128xf32>,
    %c15_i32 = arith.constant 15 : i32
    %91 = arith.addi %0, %c15_i32 : i32
    %92 = arith.index_cast %91 : i32 to index
    %93 = memref.load %arg1[%92] : memref<128xi32, #tpu.memory_space<smem>>
    %94 = arith.index_cast %93 : i32 to index
    %c0_30 = arith.constant 0 : index
    %95 = vector.load %arg2[%94, %c0_30] : memref<64x128xf32, #tpu.memory_space<vmem>>, vector<1x128xf32>
    %c15 = arith.constant 15 : index
    %c0_31 = arith.constant 0 : index
    %96 = vector.load %arg3[%c15, %c0_31] : memref<128x128xf32, #tpu.memory_space<vmem>>, vector<1x128xf32>
    tpu.vector_store %arg3[%c15, %c0_31], %95 {strides = array<i32>} : memref<128x128xf32, #tpu.memory_space<vmem>>, vector<1x128xf32>,
    %c16_i32 = arith.constant 16 : i32
    %97 = arith.addi %0, %c16_i32 : i32
    %98 = arith.index_cast %97 : i32 to index
    %99 = memref.load %arg1[%98] : memref<128xi32, #tpu.memory_space<smem>>
    %100 = arith.index_cast %99 : i32 to index
    %c0_32 = arith.constant 0 : index
    %101 = vector.load %arg2[%100, %c0_32] : memref<64x128xf32, #tpu.memory_space<vmem>>, vector<1x128xf32>
    %c16 = arith.constant 16 : index
    %c0_33 = arith.constant 0 : index
    %102 = vector.load %arg3[%c16, %c0_33] : memref<128x128xf32, #tpu.memory_space<vmem>>, vector<1x128xf32>
    tpu.vector_store %arg3[%c16, %c0_33], %101 {strides = array<i32>} : memref<128x128xf32, #tpu.memory_space<vmem>>, vector<1x128xf32>,
    %c17_i32 = arith.constant 17 : i32
    %103 = arith.addi %0, %c17_i32 : i32
    %104 = arith.index_cast %103 : i32 to index
    %105 = memref.load %arg1[%104] : memref<128xi32, #tpu.memory_space<smem>>
    %106 = arith.index_cast %105 : i32 to index
    %c0_34 = arith.constant 0 : index
    %107 = vector.load %arg2[%106, %c0_34] : memref<64x128xf32, #tpu.memory_space<vmem>>, vector<1x128xf32>
    %c17 = arith.constant 17 : index
    %c0_35 = arith.constant 0 : index
    %108 = vector.load %arg3[%c17, %c0_35] : memref<128x128xf32, #tpu.memory_space<vmem>>, vector<1x128xf32>
    tpu.vector_store %arg3[%c17, %c0_35], %107 {strides = array<i32>} : memref<128x128xf32, #tpu.memory_space<vmem>>, vector<1x128xf32>,
    %c18_i32 = arith.constant 18 : i32
    %109 = arith.addi %0, %c18_i32 : i32
    %110 = arith.index_cast %109 : i32 to index
    %111 = memref.load %arg1[%110] : memref<128xi32, #tpu.memory_space<smem>>
    %112 = arith.index_cast %111 : i32 to index
    %c0_36 = arith.constant 0 : index
    %113 = vector.load %arg2[%112, %c0_36] : memref<64x128xf32, #tpu.memory_space<vmem>>, vector<1x128xf32>
    %c18 = arith.constant 18 : index
    %c0_37 = arith.constant 0 : index
    %114 = vector.load %arg3[%c18, %c0_37] : memref<128x128xf32, #tpu.memory_space<vmem>>, vector<1x128xf32>
    tpu.vector_store %arg3[%c18, %c0_37], %113 {strides = array<i32>} : memref<128x128xf32, #tpu.memory_space<vmem>>, vector<1x128xf32>,
    %c19_i32 = arith.constant 19 : i32
    %115 = arith.addi %0, %c19_i32 : i32
    %116 = arith.index_cast %115 : i32 to index
    %117 = memref.load %arg1[%116] : memref<128xi32, #tpu.memory_space<smem>>
    %118 = arith.index_cast %117 : i32 to index
    %c0_38 = arith.constant 0 : index
    %119 = vector.load %arg2[%118, %c0_38] : memref<64x128xf32, #tpu.memory_space<vmem>>, vector<1x128xf32>
    %c19 = arith.constant 19 : index
    %c0_39 = arith.constant 0 : index
    %120 = vector.load %arg3[%c19, %c0_39] : memref<128x128xf32, #tpu.memory_space<vmem>>, vector<1x128xf32>
    tpu.vector_store %arg3[%c19, %c0_39], %119 {strides = array<i32>} : memref<128x128xf32, #tpu.memory_space<vmem>>, vector<1x128xf32>,
    %c20_i32 = arith.constant 20 : i32
    %121 = arith.addi %0, %c20_i32 : i32
    %122 = arith.index_cast %121 : i32 to index
    %123 = memref.load %arg1[%122] : memref<128xi32, #tpu.memory_space<smem>>
    %124 = arith.index_cast %123 : i32 to index
    %c0_40 = arith.constant 0 : index
    %125 = vector.load %arg2[%124, %c0_40] : memref<64x128xf32, #tpu.memory_space<vmem>>, vector<1x128xf32>
    %c20 = arith.constant 20 : index
    %c0_41 = arith.constant 0 : index
    %126 = vector.load %arg3[%c20, %c0_41] : memref<128x128xf32, #tpu.memory_space<vmem>>, vector<1x128xf32>
    tpu.vector_store %arg3[%c20, %c0_41], %125 {strides = array<i32>} : memref<128x128xf32, #tpu.memory_space<vmem>>, vector<1x128xf32>,
    %c21_i32 = arith.constant 21 : i32
    %127 = arith.addi %0, %c21_i32 : i32
    %128 = arith.index_cast %127 : i32 to index
    %129 = memref.load %arg1[%128] : memref<128xi32, #tpu.memory_space<smem>>
    %130 = arith.index_cast %129 : i32 to index
    %c0_42 = arith.constant 0 : index
    %131 = vector.load %arg2[%130, %c0_42] : memref<64x128xf32, #tpu.memory_space<vmem>>, vector<1x128xf32>
    %c21 = arith.constant 21 : index
    %c0_43 = arith.constant 0 : index
    %132 = vector.load %arg3[%c21, %c0_43] : memref<128x128xf32, #tpu.memory_space<vmem>>, vector<1x128xf32>
    tpu.vector_store %arg3[%c21, %c0_43], %131 {strides = array<i32>} : memref<128x128xf32, #tpu.memory_space<vmem>>, vector<1x128xf32>,
    %c22_i32 = arith.constant 22 : i32
    %133 = arith.addi %0, %c22_i32 : i32
    %134 = arith.index_cast %133 : i32 to index
    %135 = memref.load %arg1[%134] : memref<128xi32, #tpu.memory_space<smem>>
    %136 = arith.index_cast %135 : i32 to index
    %c0_44 = arith.constant 0 : index
    %137 = vector.load %arg2[%136, %c0_44] : memref<64x128xf32, #tpu.memory_space<vmem>>, vector<1x128xf32>
    %c22 = arith.constant 22 : index
    %c0_45 = arith.constant 0 : index
    %138 = vector.load %arg3[%c22, %c0_45] : memref<128x128xf32, #tpu.memory_space<vmem>>, vector<1x128xf32>
    tpu.vector_store %arg3[%c22, %c0_45], %137 {strides = array<i32>} : memref<128x128xf32, #tpu.memory_space<vmem>>, vector<1x128xf32>,
    %c23_i32 = arith.constant 23 : i32
    %139 = arith.addi %0, %c23_i32 : i32
    %140 = arith.index_cast %139 : i32 to index
    %141 = memref.load %arg1[%140] : memref<128xi32, #tpu.memory_space<smem>>
    %142 = arith.index_cast %141 : i32 to index
    %c0_46 = arith.constant 0 : index
    %143 = vector.load %arg2[%142, %c0_46] : memref<64x128xf32, #tpu.memory_space<vmem>>, vector<1x128xf32>
    %c23 = arith.constant 23 : index
    %c0_47 = arith.constant 0 : index
    %144 = vector.load %arg3[%c23, %c0_47] : memref<128x128xf32, #tpu.memory_space<vmem>>, vector<1x128xf32>
    tpu.vector_store %arg3[%c23, %c0_47], %143 {strides = array<i32>} : memref<128x128xf32, #tpu.memory_space<vmem>>, vector<1x128xf32>,
    %c24_i32 = arith.constant 24 : i32
    %145 = arith.addi %0, %c24_i32 : i32
    %146 = arith.index_cast %145 : i32 to index
    %147 = memref.load %arg1[%146] : memref<128xi32, #tpu.memory_space<smem>>
    %148 = arith.index_cast %147 : i32 to index
    %c0_48 = arith.constant 0 : index
    %149 = vector.load %arg2[%148, %c0_48] : memref<64x128xf32, #tpu.memory_space<vmem>>, vector<1x128xf32>
    %c24 = arith.constant 24 : index
    %c0_49 = arith.constant 0 : index
    %150 = vector.load %arg3[%c24, %c0_49] : memref<128x128xf32, #tpu.memory_space<vmem>>, vector<1x128xf32>
    tpu.vector_store %arg3[%c24, %c0_49], %149 {strides = array<i32>} : memref<128x128xf32, #tpu.memory_space<vmem>>, vector<1x128xf32>,
    %c25_i32 = arith.constant 25 : i32
    %151 = arith.addi %0, %c25_i32 : i32
    %152 = arith.index_cast %151 : i32 to index
    %153 = memref.load %arg1[%152] : memref<128xi32, #tpu.memory_space<smem>>
    %154 = arith.index_cast %153 : i32 to index
    %c0_50 = arith.constant 0 : index
    %155 = vector.load %arg2[%154, %c0_50] : memref<64x128xf32, #tpu.memory_space<vmem>>, vector<1x128xf32>
    %c25 = arith.constant 25 : index
    %c0_51 = arith.constant 0 : index
    %156 = vector.load %arg3[%c25, %c0_51] : memref<128x128xf32, #tpu.memory_space<vmem>>, vector<1x128xf32>
    tpu.vector_store %arg3[%c25, %c0_51], %155 {strides = array<i32>} : memref<128x128xf32, #tpu.memory_space<vmem>>, vector<1x128xf32>,
    %c26_i32 = arith.constant 26 : i32
    %157 = arith.addi %0, %c26_i32 : i32
    %158 = arith.index_cast %157 : i32 to index
    %159 = memref.load %arg1[%158] : memref<128xi32, #tpu.memory_space<smem>>
    %160 = arith.index_cast %159 : i32 to index
    %c0_52 = arith.constant 0 : index
    %161 = vector.load %arg2[%160, %c0_52] : memref<64x128xf32, #tpu.memory_space<vmem>>, vector<1x128xf32>
    %c26 = arith.constant 26 : index
    %c0_53 = arith.constant 0 : index
    %162 = vector.load %arg3[%c26, %c0_53] : memref<128x128xf32, #tpu.memory_space<vmem>>, vector<1x128xf32>
    tpu.vector_store %arg3[%c26, %c0_53], %161 {strides = array<i32>} : memref<128x128xf32, #tpu.memory_space<vmem>>, vector<1x128xf32>,
    %c27_i32 = arith.constant 27 : i32
    %163 = arith.addi %0, %c27_i32 : i32
    %164 = arith.index_cast %163 : i32 to index
    %165 = memref.load %arg1[%164] : memref<128xi32, #tpu.memory_space<smem>>
    %166 = arith.index_cast %165 : i32 to index
    %c0_54 = arith.constant 0 : index
    %167 = vector.load %arg2[%166, %c0_54] : memref<64x128xf32, #tpu.memory_space<vmem>>, vector<1x128xf32>
    %c27 = arith.constant 27 : index
    %c0_55 = arith.constant 0 : index
    %168 = vector.load %arg3[%c27, %c0_55] : memref<128x128xf32, #tpu.memory_space<vmem>>, vector<1x128xf32>
    tpu.vector_store %arg3[%c27, %c0_55], %167 {strides = array<i32>} : memref<128x128xf32, #tpu.memory_space<vmem>>, vector<1x128xf32>,
    %c28_i32 = arith.constant 28 : i32
    %169 = arith.addi %0, %c28_i32 : i32
    %170 = arith.index_cast %169 : i32 to index
    %171 = memref.load %arg1[%170] : memref<128xi32, #tpu.memory_space<smem>>
    %172 = arith.index_cast %171 : i32 to index
    %c0_56 = arith.constant 0 : index
    %173 = vector.load %arg2[%172, %c0_56] : memref<64x128xf32, #tpu.memory_space<vmem>>, vector<1x128xf32>
    %c28 = arith.constant 28 : index
    %c0_57 = arith.constant 0 : index
    %174 = vector.load %arg3[%c28, %c0_57] : memref<128x128xf32, #tpu.memory_space<vmem>>, vector<1x128xf32>
    tpu.vector_store %arg3[%c28, %c0_57], %173 {strides = array<i32>} : memref<128x128xf32, #tpu.memory_space<vmem>>, vector<1x128xf32>,
    %c29_i32 = arith.constant 29 : i32
    %175 = arith.addi %0, %c29_i32 : i32
    %176 = arith.index_cast %175 : i32 to index
    %177 = memref.load %arg1[%176] : memref<128xi32, #tpu.memory_space<smem>>
    %178 = arith.index_cast %177 : i32 to index
    %c0_58 = arith.constant 0 : index
    %179 = vector.load %arg2[%178, %c0_58] : memref<64x128xf32, #tpu.memory_space<vmem>>, vector<1x128xf32>
    %c29 = arith.constant 29 : index
    %c0_59 = arith.constant 0 : index
    %180 = vector.load %arg3[%c29, %c0_59] : memref<128x128xf32, #tpu.memory_space<vmem>>, vector<1x128xf32>
    tpu.vector_store %arg3[%c29, %c0_59], %179 {strides = array<i32>} : memref<128x128xf32, #tpu.memory_space<vmem>>, vector<1x128xf32>,
    %c30_i32 = arith.constant 30 : i32
    %181 = arith.addi %0, %c30_i32 : i32
    %182 = arith.index_cast %181 : i32 to index
    %183 = memref.load %arg1[%182] : memref<128xi32, #tpu.memory_space<smem>>
    %184 = arith.index_cast %183 : i32 to index
    %c0_60 = arith.constant 0 : index
    %185 = vector.load %arg2[%184, %c0_60] : memref<64x128xf32, #tpu.memory_space<vmem>>, vector<1x128xf32>
    %c30 = arith.constant 30 : index
    %c0_61 = arith.constant 0 : index
    %186 = vector.load %arg3[%c30, %c0_61] : memref<128x128xf32, #tpu.memory_space<vmem>>, vector<1x128xf32>
    tpu.vector_store %arg3[%c30, %c0_61], %185 {strides = array<i32>} : memref<128x128xf32, #tpu.memory_space<vmem>>, vector<1x128xf32>,
    %c31_i32 = arith.constant 31 : i32
    %187 = arith.addi %0, %c31_i32 : i32
    %188 = arith.index_cast %187 : i32 to index
    %189 = memref.load %arg1[%188] : memref<128xi32, #tpu.memory_space<smem>>
    %190 = arith.index_cast %189 : i32 to index
    %c0_62 = arith.constant 0 : index
    %191 = vector.load %arg2[%190, %c0_62] : memref<64x128xf32, #tpu.memory_space<vmem>>, vector<1x128xf32>
    %c31 = arith.constant 31 : index
    %c0_63 = arith.constant 0 : index
    %192 = vector.load %arg3[%c31, %c0_63] : memref<128x128xf32, #tpu.memory_space<vmem>>, vector<1x128xf32>
    tpu.vector_store %arg3[%c31, %c0_63], %191 {strides = array<i32>} : memref<128x128xf32, #tpu.memory_space<vmem>>, vector<1x128xf32>,
    %c32_i32 = arith.constant 32 : i32
    %193 = arith.addi %0, %c32_i32 : i32
    %194 = arith.index_cast %193 : i32 to index
    %195 = memref.load %arg1[%194] : memref<128xi32, #tpu.memory_space<smem>>
    %196 = arith.index_cast %195 : i32 to index
    %c0_64 = arith.constant 0 : index
    %197 = vector.load %arg2[%196, %c0_64] : memref<64x128xf32, #tpu.memory_space<vmem>>, vector<1x128xf32>
    %c32 = arith.constant 32 : index
    %c0_65 = arith.constant 0 : index
    %198 = vector.load %arg3[%c32, %c0_65] : memref<128x128xf32, #tpu.memory_space<vmem>>, vector<1x128xf32>
    tpu.vector_store %arg3[%c32, %c0_65], %197 {strides = array<i32>} : memref<128x128xf32, #tpu.memory_space<vmem>>, vector<1x128xf32>,
    %c33_i32 = arith.constant 33 : i32
    %199 = arith.addi %0, %c33_i32 : i32
    %200 = arith.index_cast %199 : i32 to index
    %201 = memref.load %arg1[%200] : memref<128xi32, #tpu.memory_space<smem>>
    %202 = arith.index_cast %201 : i32 to index
    %c0_66 = arith.constant 0 : index
    %203 = vector.load %arg2[%202, %c0_66] : memref<64x128xf32, #tpu.memory_space<vmem>>, vector<1x128xf32>
    %c33 = arith.constant 33 : index
    %c0_67 = arith.constant 0 : index
    %204 = vector.load %arg3[%c33, %c0_67] : memref<128x128xf32, #tpu.memory_space<vmem>>, vector<1x128xf32>
    tpu.vector_store %arg3[%c33, %c0_67], %203 {strides = array<i32>} : memref<128x128xf32, #tpu.memory_space<vmem>>, vector<1x128xf32>,
    %c34_i32 = arith.constant 34 : i32
    %205 = arith.addi %0, %c34_i32 : i32
    %206 = arith.index_cast %205 : i32 to index
    %207 = memref.load %arg1[%206] : memref<128xi32, #tpu.memory_space<smem>>
    %208 = arith.index_cast %207 : i32 to index
    %c0_68 = arith.constant 0 : index
    %209 = vector.load %arg2[%208, %c0_68] : memref<64x128xf32, #tpu.memory_space<vmem>>, vector<1x128xf32>
    %c34 = arith.constant 34 : index
    %c0_69 = arith.constant 0 : index
    %210 = vector.load %arg3[%c34, %c0_69] : memref<128x128xf32, #tpu.memory_space<vmem>>, vector<1x128xf32>
    tpu.vector_store %arg3[%c34, %c0_69], %209 {strides = array<i32>} : memref<128x128xf32, #tpu.memory_space<vmem>>, vector<1x128xf32>,
    %c35_i32 = arith.constant 35 : i32
    %211 = arith.addi %0, %c35_i32 : i32
    %212 = arith.index_cast %211 : i32 to index
    %213 = memref.load %arg1[%212] : memref<128xi32, #tpu.memory_space<smem>>
    %214 = arith.index_cast %213 : i32 to index
    %c0_70 = arith.constant 0 : index
    %215 = vector.load %arg2[%214, %c0_70] : memref<64x128xf32, #tpu.memory_space<vmem>>, vector<1x128xf32>
    %c35 = arith.constant 35 : index
    %c0_71 = arith.constant 0 : index
    %216 = vector.load %arg3[%c35, %c0_71] : memref<128x128xf32, #tpu.memory_space<vmem>>, vector<1x128xf32>
    tpu.vector_store %arg3[%c35, %c0_71], %215 {strides = array<i32>} : memref<128x128xf32, #tpu.memory_space<vmem>>, vector<1x128xf32>,
    %c36_i32 = arith.constant 36 : i32
    %217 = arith.addi %0, %c36_i32 : i32
    %218 = arith.index_cast %217 : i32 to index
    %219 = memref.load %arg1[%218] : memref<128xi32, #tpu.memory_space<smem>>
    %220 = arith.index_cast %219 : i32 to index
    %c0_72 = arith.constant 0 : index
    %221 = vector.load %arg2[%220, %c0_72] : memref<64x128xf32, #tpu.memory_space<vmem>>, vector<1x128xf32>
    %c36 = arith.constant 36 : index
    %c0_73 = arith.constant 0 : index
    %222 = vector.load %arg3[%c36, %c0_73] : memref<128x128xf32, #tpu.memory_space<vmem>>, vector<1x128xf32>
    tpu.vector_store %arg3[%c36, %c0_73], %221 {strides = array<i32>} : memref<128x128xf32, #tpu.memory_space<vmem>>, vector<1x128xf32>,
    %c37_i32 = arith.constant 37 : i32
    %223 = arith.addi %0, %c37_i32 : i32
    %224 = arith.index_cast %223 : i32 to index
    %225 = memref.load %arg1[%224] : memref<128xi32, #tpu.memory_space<smem>>
    %226 = arith.index_cast %225 : i32 to index
    %c0_74 = arith.constant 0 : index
    %227 = vector.load %arg2[%226, %c0_74] : memref<64x128xf32, #tpu.memory_space<vmem>>, vector<1x128xf32>
    %c37 = arith.constant 37 : index
    %c0_75 = arith.constant 0 : index
    %228 = vector.load %arg3[%c37, %c0_75] : memref<128x128xf32, #tpu.memory_space<vmem>>, vector<1x128xf32>
    tpu.vector_store %arg3[%c37, %c0_75], %227 {strides = array<i32>} : memref<128x128xf32, #tpu.memory_space<vmem>>, vector<1x128xf32>,
    %c38_i32 = arith.constant 38 : i32
    %229 = arith.addi %0, %c38_i32 : i32
    %230 = arith.index_cast %229 : i32 to index
    %231 = memref.load %arg1[%230] : memref<128xi32, #tpu.memory_space<smem>>
    %232 = arith.index_cast %231 : i32 to index
    %c0_76 = arith.constant 0 : index
    %233 = vector.load %arg2[%232, %c0_76] : memref<64x128xf32, #tpu.memory_space<vmem>>, vector<1x128xf32>
    %c38 = arith.constant 38 : index
    %c0_77 = arith.constant 0 : index
    %234 = vector.load %arg3[%c38, %c0_77] : memref<128x128xf32, #tpu.memory_space<vmem>>, vector<1x128xf32>
    tpu.vector_store %arg3[%c38, %c0_77], %233 {strides = array<i32>} : memref<128x128xf32, #tpu.memory_space<vmem>>, vector<1x128xf32>,
    %c39_i32 = arith.constant 39 : i32
    %235 = arith.addi %0, %c39_i32 : i32
    %236 = arith.index_cast %235 : i32 to index
    %237 = memref.load %arg1[%236] : memref<128xi32, #tpu.memory_space<smem>>
    %238 = arith.index_cast %237 : i32 to index
    %c0_78 = arith.constant 0 : index
    %239 = vector.load %arg2[%238, %c0_78] : memref<64x128xf32, #tpu.memory_space<vmem>>, vector<1x128xf32>
    %c39 = arith.constant 39 : index
    %c0_79 = arith.constant 0 : index
    %240 = vector.load %arg3[%c39, %c0_79] : memref<128x128xf32, #tpu.memory_space<vmem>>, vector<1x128xf32>
    tpu.vector_store %arg3[%c39, %c0_79], %239 {strides = array<i32>} : memref<128x128xf32, #tpu.memory_space<vmem>>, vector<1x128xf32>,
    %c40_i32 = arith.constant 40 : i32
    %241 = arith.addi %0, %c40_i32 : i32
    %242 = arith.index_cast %241 : i32 to index
    %243 = memref.load %arg1[%242] : memref<128xi32, #tpu.memory_space<smem>>
    %244 = arith.index_cast %243 : i32 to index
    %c0_80 = arith.constant 0 : index
    %245 = vector.load %arg2[%244, %c0_80] : memref<64x128xf32, #tpu.memory_space<vmem>>, vector<1x128xf32>
    %c40 = arith.constant 40 : index
    %c0_81 = arith.constant 0 : index
    %246 = vector.load %arg3[%c40, %c0_81] : memref<128x128xf32, #tpu.memory_space<vmem>>, vector<1x128xf32>
    tpu.vector_store %arg3[%c40, %c0_81], %245 {strides = array<i32>} : memref<128x128xf32, #tpu.memory_space<vmem>>, vector<1x128xf32>,
    %c41_i32 = arith.constant 41 : i32
    %247 = arith.addi %0, %c41_i32 : i32
    %248 = arith.index_cast %247 : i32 to index
    %249 = memref.load %arg1[%248] : memref<128xi32, #tpu.memory_space<smem>>
    %250 = arith.index_cast %249 : i32 to index
    %c0_82 = arith.constant 0 : index
    %251 = vector.load %arg2[%250, %c0_82] : memref<64x128xf32, #tpu.memory_space<vmem>>, vector<1x128xf32>
    %c41 = arith.constant 41 : index
    %c0_83 = arith.constant 0 : index
    %252 = vector.load %arg3[%c41, %c0_83] : memref<128x128xf32, #tpu.memory_space<vmem>>, vector<1x128xf32>
    tpu.vector_store %arg3[%c41, %c0_83], %251 {strides = array<i32>} : memref<128x128xf32, #tpu.memory_space<vmem>>, vector<1x128xf32>,
    %c42_i32 = arith.constant 42 : i32
    %253 = arith.addi %0, %c42_i32 : i32
    %254 = arith.index_cast %253 : i32 to index
    %255 = memref.load %arg1[%254] : memref<128xi32, #tpu.memory_space<smem>>
    %256 = arith.index_cast %255 : i32 to index
    %c0_84 = arith.constant 0 : index
    %257 = vector.load %arg2[%256, %c0_84] : memref<64x128xf32, #tpu.memory_space<vmem>>, vector<1x128xf32>
    %c42 = arith.constant 42 : index
    %c0_85 = arith.constant 0 : index
    %258 = vector.load %arg3[%c42, %c0_85] : memref<128x128xf32, #tpu.memory_space<vmem>>, vector<1x128xf32>
    tpu.vector_store %arg3[%c42, %c0_85], %257 {strides = array<i32>} : memref<128x128xf32, #tpu.memory_space<vmem>>, vector<1x128xf32>,
    %c43_i32 = arith.constant 43 : i32
    %259 = arith.addi %0, %c43_i32 : i32
    %260 = arith.index_cast %259 : i32 to index
    %261 = memref.load %arg1[%260] : memref<128xi32, #tpu.memory_space<smem>>
    %262 = arith.index_cast %261 : i32 to index
    %c0_86 = arith.constant 0 : index
    %263 = vector.load %arg2[%262, %c0_86] : memref<64x128xf32, #tpu.memory_space<vmem>>, vector<1x128xf32>
    %c43 = arith.constant 43 : index
    %c0_87 = arith.constant 0 : index
    %264 = vector.load %arg3[%c43, %c0_87] : memref<128x128xf32, #tpu.memory_space<vmem>>, vector<1x128xf32>
    tpu.vector_store %arg3[%c43, %c0_87], %263 {strides = array<i32>} : memref<128x128xf32, #tpu.memory_space<vmem>>, vector<1x128xf32>,
    %c44_i32 = arith.constant 44 : i32
    %265 = arith.addi %0, %c44_i32 : i32
    %266 = arith.index_cast %265 : i32 to index
    %267 = memref.load %arg1[%266] : memref<128xi32, #tpu.memory_space<smem>>
    %268 = arith.index_cast %267 : i32 to index
    %c0_88 = arith.constant 0 : index
    %269 = vector.load %arg2[%268, %c0_88] : memref<64x128xf32, #tpu.memory_space<vmem>>, vector<1x128xf32>
    %c44 = arith.constant 44 : index
    %c0_89 = arith.constant 0 : index
    %270 = vector.load %arg3[%c44, %c0_89] : memref<128x128xf32, #tpu.memory_space<vmem>>, vector<1x128xf32>
    tpu.vector_store %arg3[%c44, %c0_89], %269 {strides = array<i32>} : memref<128x128xf32, #tpu.memory_space<vmem>>, vector<1x128xf32>,
    %c45_i32 = arith.constant 45 : i32
    %271 = arith.addi %0, %c45_i32 : i32
    %272 = arith.index_cast %271 : i32 to index
    %273 = memref.load %arg1[%272] : memref<128xi32, #tpu.memory_space<smem>>
    %274 = arith.index_cast %273 : i32 to index
    %c0_90 = arith.constant 0 : index
    %275 = vector.load %arg2[%274, %c0_90] : memref<64x128xf32, #tpu.memory_space<vmem>>, vector<1x128xf32>
    %c45 = arith.constant 45 : index
    %c0_91 = arith.constant 0 : index
    %276 = vector.load %arg3[%c45, %c0_91] : memref<128x128xf32, #tpu.memory_space<vmem>>, vector<1x128xf32>
    tpu.vector_store %arg3[%c45, %c0_91], %275 {strides = array<i32>} : memref<128x128xf32, #tpu.memory_space<vmem>>, vector<1x128xf32>,
    %c46_i32 = arith.constant 46 : i32
    %277 = arith.addi %0, %c46_i32 : i32
    %278 = arith.index_cast %277 : i32 to index
    %279 = memref.load %arg1[%278] : memref<128xi32, #tpu.memory_space<smem>>
    %280 = arith.index_cast %279 : i32 to index
    %c0_92 = arith.constant 0 : index
    %281 = vector.load %arg2[%280, %c0_92] : memref<64x128xf32, #tpu.memory_space<vmem>>, vector<1x128xf32>
    %c46 = arith.constant 46 : index
    %c0_93 = arith.constant 0 : index
    %282 = vector.load %arg3[%c46, %c0_93] : memref<128x128xf32, #tpu.memory_space<vmem>>, vector<1x128xf32>
    tpu.vector_store %arg3[%c46, %c0_93], %281 {strides = array<i32>} : memref<128x128xf32, #tpu.memory_space<vmem>>, vector<1x128xf32>,
    %c47_i32 = arith.constant 47 : i32
    %283 = arith.addi %0, %c47_i32 : i32
    %284 = arith.index_cast %283 : i32 to index
    %285 = memref.load %arg1[%284] : memref<128xi32, #tpu.memory_space<smem>>
    %286 = arith.index_cast %285 : i32 to index
    %c0_94 = arith.constant 0 : index
    %287 = vector.load %arg2[%286, %c0_94] : memref<64x128xf32, #tpu.memory_space<vmem>>, vector<1x128xf32>
    %c47 = arith.constant 47 : index
    %c0_95 = arith.constant 0 : index
    %288 = vector.load %arg3[%c47, %c0_95] : memref<128x128xf32, #tpu.memory_space<vmem>>, vector<1x128xf32>
    tpu.vector_store %arg3[%c47, %c0_95], %287 {strides = array<i32>} : memref<128x128xf32, #tpu.memory_space<vmem>>, vector<1x128xf32>,
    %c48_i32 = arith.constant 48 : i32
    %289 = arith.addi %0, %c48_i32 : i32
    %290 = arith.index_cast %289 : i32 to index
    %291 = memref.load %arg1[%290] : memref<128xi32, #tpu.memory_space<smem>>
    %292 = arith.index_cast %291 : i32 to index
    %c0_96 = arith.constant 0 : index
    %293 = vector.load %arg2[%292, %c0_96] : memref<64x128xf32, #tpu.memory_space<vmem>>, vector<1x128xf32>
    %c48 = arith.constant 48 : index
    %c0_97 = arith.constant 0 : index
    %294 = vector.load %arg3[%c48, %c0_97] : memref<128x128xf32, #tpu.memory_space<vmem>>, vector<1x128xf32>
    tpu.vector_store %arg3[%c48, %c0_97], %293 {strides = array<i32>} : memref<128x128xf32, #tpu.memory_space<vmem>>, vector<1x128xf32>,
    %c49_i32 = arith.constant 49 : i32
    %295 = arith.addi %0, %c49_i32 : i32
    %296 = arith.index_cast %295 : i32 to index
    %297 = memref.load %arg1[%296] : memref<128xi32, #tpu.memory_space<smem>>
    %298 = arith.index_cast %297 : i32 to index
    %c0_98 = arith.constant 0 : index
    %299 = vector.load %arg2[%298, %c0_98] : memref<64x128xf32, #tpu.memory_space<vmem>>, vector<1x128xf32>
    %c49 = arith.constant 49 : index
    %c0_99 = arith.constant 0 : index
    %300 = vector.load %arg3[%c49, %c0_99] : memref<128x128xf32, #tpu.memory_space<vmem>>, vector<1x128xf32>
    tpu.vector_store %arg3[%c49, %c0_99], %299 {strides = array<i32>} : memref<128x128xf32, #tpu.memory_space<vmem>>, vector<1x128xf32>,
    %c50_i32 = arith.constant 50 : i32
    %301 = arith.addi %0, %c50_i32 : i32
    %302 = arith.index_cast %301 : i32 to index
    %303 = memref.load %arg1[%302] : memref<128xi32, #tpu.memory_space<smem>>
    %304 = arith.index_cast %303 : i32 to index
    %c0_100 = arith.constant 0 : index
    %305 = vector.load %arg2[%304, %c0_100] : memref<64x128xf32, #tpu.memory_space<vmem>>, vector<1x128xf32>
    %c50 = arith.constant 50 : index
    %c0_101 = arith.constant 0 : index
    %306 = vector.load %arg3[%c50, %c0_101] : memref<128x128xf32, #tpu.memory_space<vmem>>, vector<1x128xf32>
    tpu.vector_store %arg3[%c50, %c0_101], %305 {strides = array<i32>} : memref<128x128xf32, #tpu.memory_space<vmem>>, vector<1x128xf32>,
    %c51_i32 = arith.constant 51 : i32
    %307 = arith.addi %0, %c51_i32 : i32
    %308 = arith.index_cast %307 : i32 to index
    %309 = memref.load %arg1[%308] : memref<128xi32, #tpu.memory_space<smem>>
    %310 = arith.index_cast %309 : i32 to index
    %c0_102 = arith.constant 0 : index
    %311 = vector.load %arg2[%310, %c0_102] : memref<64x128xf32, #tpu.memory_space<vmem>>, vector<1x128xf32>
    %c51 = arith.constant 51 : index
    %c0_103 = arith.constant 0 : index
    %312 = vector.load %arg3[%c51, %c0_103] : memref<128x128xf32, #tpu.memory_space<vmem>>, vector<1x128xf32>
    tpu.vector_store %arg3[%c51, %c0_103], %311 {strides = array<i32>} : memref<128x128xf32, #tpu.memory_space<vmem>>, vector<1x128xf32>,
    %c52_i32 = arith.constant 52 : i32
    %313 = arith.addi %0, %c52_i32 : i32
    %314 = arith.index_cast %313 : i32 to index
    %315 = memref.load %arg1[%314] : memref<128xi32, #tpu.memory_space<smem>>
    %316 = arith.index_cast %315 : i32 to index
    %c0_104 = arith.constant 0 : index
    %317 = vector.load %arg2[%316, %c0_104] : memref<64x128xf32, #tpu.memory_space<vmem>>, vector<1x128xf32>
    %c52 = arith.constant 52 : index
    %c0_105 = arith.constant 0 : index
    %318 = vector.load %arg3[%c52, %c0_105] : memref<128x128xf32, #tpu.memory_space<vmem>>, vector<1x128xf32>
    tpu.vector_store %arg3[%c52, %c0_105], %317 {strides = array<i32>} : memref<128x128xf32, #tpu.memory_space<vmem>>, vector<1x128xf32>,
    %c53_i32 = arith.constant 53 : i32
    %319 = arith.addi %0, %c53_i32 : i32
    %320 = arith.index_cast %319 : i32 to index
    %321 = memref.load %arg1[%320] : memref<128xi32, #tpu.memory_space<smem>>
    %322 = arith.index_cast %321 : i32 to index
    %c0_106 = arith.constant 0 : index
    %323 = vector.load %arg2[%322, %c0_106] : memref<64x128xf32, #tpu.memory_space<vmem>>, vector<1x128xf32>
    %c53 = arith.constant 53 : index
    %c0_107 = arith.constant 0 : index
    %324 = vector.load %arg3[%c53, %c0_107] : memref<128x128xf32, #tpu.memory_space<vmem>>, vector<1x128xf32>
    tpu.vector_store %arg3[%c53, %c0_107], %323 {strides = array<i32>} : memref<128x128xf32, #tpu.memory_space<vmem>>, vector<1x128xf32>,
    %c54_i32 = arith.constant 54 : i32
    %325 = arith.addi %0, %c54_i32 : i32
    %326 = arith.index_cast %325 : i32 to index
    %327 = memref.load %arg1[%326] : memref<128xi32, #tpu.memory_space<smem>>
    %328 = arith.index_cast %327 : i32 to index
    %c0_108 = arith.constant 0 : index
    %329 = vector.load %arg2[%328, %c0_108] : memref<64x128xf32, #tpu.memory_space<vmem>>, vector<1x128xf32>
    %c54 = arith.constant 54 : index
    %c0_109 = arith.constant 0 : index
    %330 = vector.load %arg3[%c54, %c0_109] : memref<128x128xf32, #tpu.memory_space<vmem>>, vector<1x128xf32>
    tpu.vector_store %arg3[%c54, %c0_109], %329 {strides = array<i32>} : memref<128x128xf32, #tpu.memory_space<vmem>>, vector<1x128xf32>,
    %c55_i32 = arith.constant 55 : i32
    %331 = arith.addi %0, %c55_i32 : i32
    %332 = arith.index_cast %331 : i32 to index
    %333 = memref.load %arg1[%332] : memref<128xi32, #tpu.memory_space<smem>>
    %334 = arith.index_cast %333 : i32 to index
    %c0_110 = arith.constant 0 : index
    %335 = vector.load %arg2[%334, %c0_110] : memref<64x128xf32, #tpu.memory_space<vmem>>, vector<1x128xf32>
    %c55 = arith.constant 55 : index
    %c0_111 = arith.constant 0 : index
    %336 = vector.load %arg3[%c55, %c0_111] : memref<128x128xf32, #tpu.memory_space<vmem>>, vector<1x128xf32>
    tpu.vector_store %arg3[%c55, %c0_111], %335 {strides = array<i32>} : memref<128x128xf32, #tpu.memory_space<vmem>>, vector<1x128xf32>,
    %c56_i32 = arith.constant 56 : i32
    %337 = arith.addi %0, %c56_i32 : i32
    %338 = arith.index_cast %337 : i32 to index
    %339 = memref.load %arg1[%338] : memref<128xi32, #tpu.memory_space<smem>>
    %340 = arith.index_cast %339 : i32 to index
    %c0_112 = arith.constant 0 : index
    %341 = vector.load %arg2[%340, %c0_112] : memref<64x128xf32, #tpu.memory_space<vmem>>, vector<1x128xf32>
    %c56 = arith.constant 56 : index
    %c0_113 = arith.constant 0 : index
    %342 = vector.load %arg3[%c56, %c0_113] : memref<128x128xf32, #tpu.memory_space<vmem>>, vector<1x128xf32>
    tpu.vector_store %arg3[%c56, %c0_113], %341 {strides = array<i32>} : memref<128x128xf32, #tpu.memory_space<vmem>>, vector<1x128xf32>,
    %c57_i32 = arith.constant 57 : i32
    %343 = arith.addi %0, %c57_i32 : i32
    %344 = arith.index_cast %343 : i32 to index
    %345 = memref.load %arg1[%344] : memref<128xi32, #tpu.memory_space<smem>>
    %346 = arith.index_cast %345 : i32 to index
    %c0_114 = arith.constant 0 : index
    %347 = vector.load %arg2[%346, %c0_114] : memref<64x128xf32, #tpu.memory_space<vmem>>, vector<1x128xf32>
    %c57 = arith.constant 57 : index
    %c0_115 = arith.constant 0 : index
    %348 = vector.load %arg3[%c57, %c0_115] : memref<128x128xf32, #tpu.memory_space<vmem>>, vector<1x128xf32>
    tpu.vector_store %arg3[%c57, %c0_115], %347 {strides = array<i32>} : memref<128x128xf32, #tpu.memory_space<vmem>>, vector<1x128xf32>,
    %c58_i32 = arith.constant 58 : i32
    %349 = arith.addi %0, %c58_i32 : i32
    %350 = arith.index_cast %349 : i32 to index
    %351 = memref.load %arg1[%350] : memref<128xi32, #tpu.memory_space<smem>>
    %352 = arith.index_cast %351 : i32 to index
    %c0_116 = arith.constant 0 : index
    %353 = vector.load %arg2[%352, %c0_116] : memref<64x128xf32, #tpu.memory_space<vmem>>, vector<1x128xf32>
    %c58 = arith.constant 58 : index
    %c0_117 = arith.constant 0 : index
    %354 = vector.load %arg3[%c58, %c0_117] : memref<128x128xf32, #tpu.memory_space<vmem>>, vector<1x128xf32>
    tpu.vector_store %arg3[%c58, %c0_117], %353 {strides = array<i32>} : memref<128x128xf32, #tpu.memory_space<vmem>>, vector<1x128xf32>,
    %c59_i32 = arith.constant 59 : i32
    %355 = arith.addi %0, %c59_i32 : i32
    %356 = arith.index_cast %355 : i32 to index
    %357 = memref.load %arg1[%356] : memref<128xi32, #tpu.memory_space<smem>>
    %358 = arith.index_cast %357 : i32 to index
    %c0_118 = arith.constant 0 : index
    %359 = vector.load %arg2[%358, %c0_118] : memref<64x128xf32, #tpu.memory_space<vmem>>, vector<1x128xf32>
    %c59 = arith.constant 59 : index
    %c0_119 = arith.constant 0 : index
    %360 = vector.load %arg3[%c59, %c0_119] : memref<128x128xf32, #tpu.memory_space<vmem>>, vector<1x128xf32>
    tpu.vector_store %arg3[%c59, %c0_119], %359 {strides = array<i32>} : memref<128x128xf32, #tpu.memory_space<vmem>>, vector<1x128xf32>,
    %c60_i32 = arith.constant 60 : i32
    %361 = arith.addi %0, %c60_i32 : i32
    %362 = arith.index_cast %361 : i32 to index
    %363 = memref.load %arg1[%362] : memref<128xi32, #tpu.memory_space<smem>>
    %364 = arith.index_cast %363 : i32 to index
    %c0_120 = arith.constant 0 : index
    %365 = vector.load %arg2[%364, %c0_120] : memref<64x128xf32, #tpu.memory_space<vmem>>, vector<1x128xf32>
    %c60 = arith.constant 60 : index
    %c0_121 = arith.constant 0 : index
    %366 = vector.load %arg3[%c60, %c0_121] : memref<128x128xf32, #tpu.memory_space<vmem>>, vector<1x128xf32>
    tpu.vector_store %arg3[%c60, %c0_121], %365 {strides = array<i32>} : memref<128x128xf32, #tpu.memory_space<vmem>>, vector<1x128xf32>,
    %c61_i32 = arith.constant 61 : i32
    %367 = arith.addi %0, %c61_i32 : i32
    %368 = arith.index_cast %367 : i32 to index
    %369 = memref.load %arg1[%368] : memref<128xi32, #tpu.memory_space<smem>>
    %370 = arith.index_cast %369 : i32 to index
    %c0_122 = arith.constant 0 : index
    %371 = vector.load %arg2[%370, %c0_122] : memref<64x128xf32, #tpu.memory_space<vmem>>, vector<1x128xf32>
    %c61 = arith.constant 61 : index
    %c0_123 = arith.constant 0 : index
    %372 = vector.load %arg3[%c61, %c0_123] : memref<128x128xf32, #tpu.memory_space<vmem>>, vector<1x128xf32>
    tpu.vector_store %arg3[%c61, %c0_123], %371 {strides = array<i32>} : memref<128x128xf32, #tpu.memory_space<vmem>>, vector<1x128xf32>,
    %c62_i32 = arith.constant 62 : i32
    %373 = arith.addi %0, %c62_i32 : i32
    %374 = arith.index_cast %373 : i32 to index
    %375 = memref.load %arg1[%374] : memref<128xi32, #tpu.memory_space<smem>>
    %376 = arith.index_cast %375 : i32 to index
    %c0_124 = arith.constant 0 : index
    %377 = vector.load %arg2[%376, %c0_124] : memref<64x128xf32, #tpu.memory_space<vmem>>, vector<1x128xf32>
    %c62 = arith.constant 62 : index
    %c0_125 = arith.constant 0 : index
    %378 = vector.load %arg3[%c62, %c0_125] : memref<128x128xf32, #tpu.memory_space<vmem>>, vector<1x128xf32>
    tpu.vector_store %arg3[%c62, %c0_125], %377 {strides = array<i32>} : memref<128x128xf32, #tpu.memory_space<vmem>>, vector<1x128xf32>,
    %c63_i32 = arith.constant 63 : i32
    %379 = arith.addi %0, %c63_i32 : i32
    %380 = arith.index_cast %379 : i32 to index
    %381 = memref.load %arg1[%380] : memref<128xi32, #tpu.memory_space<smem>>
    %382 = arith.index_cast %381 : i32 to index
    %c0_126 = arith.constant 0 : index
    %383 = vector.load %arg2[%382, %c0_126] : memref<64x128xf32, #tpu.memory_space<vmem>>, vector<1x128xf32>
    %c63 = arith.constant 63 : index
    %c0_127 = arith.constant 0 : index
    %384 = vector.load %arg3[%c63, %c0_127] : memref<128x128xf32, #tpu.memory_space<vmem>>, vector<1x128xf32>
    tpu.vector_store %arg3[%c63, %c0_127], %383 {strides = array<i32>} : memref<128x128xf32, #tpu.memory_space<vmem>>, vector<1x128xf32>,
    %c64_i32 = arith.constant 64 : i32
    %385 = arith.addi %0, %c64_i32 : i32
    %386 = arith.index_cast %385 : i32 to index
    %387 = memref.load %arg1[%386] : memref<128xi32, #tpu.memory_space<smem>>
    %388 = arith.index_cast %387 : i32 to index
    %c0_128 = arith.constant 0 : index
    %389 = vector.load %arg2[%388, %c0_128] : memref<64x128xf32, #tpu.memory_space<vmem>>, vector<1x128xf32>
    %c64 = arith.constant 64 : index
    %c0_129 = arith.constant 0 : index
    %390 = vector.load %arg3[%c64, %c0_129] : memref<128x128xf32, #tpu.memory_space<vmem>>, vector<1x128xf32>
    tpu.vector_store %arg3[%c64, %c0_129], %389 {strides = array<i32>} : memref<128x128xf32, #tpu.memory_space<vmem>>, vector<1x128xf32>,
    %c65_i32 = arith.constant 65 : i32
    %391 = arith.addi %0, %c65_i32 : i32
    %392 = arith.index_cast %391 : i32 to index
    %393 = memref.load %arg1[%392] : memref<128xi32, #tpu.memory_space<smem>>
    %394 = arith.index_cast %393 : i32 to index
    %c0_130 = arith.constant 0 : index
    %395 = vector.load %arg2[%394, %c0_130] : memref<64x128xf32, #tpu.memory_space<vmem>>, vector<1x128xf32>
    %c65 = arith.constant 65 : index
    %c0_131 = arith.constant 0 : index
    %396 = vector.load %arg3[%c65, %c0_131] : memref<128x128xf32, #tpu.memory_space<vmem>>, vector<1x128xf32>
    tpu.vector_store %arg3[%c65, %c0_131], %395 {strides = array<i32>} : memref<128x128xf32, #tpu.memory_space<vmem>>, vector<1x128xf32>,
    %c66_i32 = arith.constant 66 : i32
    %397 = arith.addi %0, %c66_i32 : i32
    %398 = arith.index_cast %397 : i32 to index
    %399 = memref.load %arg1[%398] : memref<128xi32, #tpu.memory_space<smem>>
    %400 = arith.index_cast %399 : i32 to index
    %c0_132 = arith.constant 0 : index
    %401 = vector.load %arg2[%400, %c0_132] : memref<64x128xf32, #tpu.memory_space<vmem>>, vector<1x128xf32>
    %c66 = arith.constant 66 : index
    %c0_133 = arith.constant 0 : index
    %402 = vector.load %arg3[%c66, %c0_133] : memref<128x128xf32, #tpu.memory_space<vmem>>, vector<1x128xf32>
    tpu.vector_store %arg3[%c66, %c0_133], %401 {strides = array<i32>} : memref<128x128xf32, #tpu.memory_space<vmem>>, vector<1x128xf32>,
    %c67_i32 = arith.constant 67 : i32
    %403 = arith.addi %0, %c67_i32 : i32
    %404 = arith.index_cast %403 : i32 to index
    %405 = memref.load %arg1[%404] : memref<128xi32, #tpu.memory_space<smem>>
    %406 = arith.index_cast %405 : i32 to index
    %c0_134 = arith.constant 0 : index
    %407 = vector.load %arg2[%406, %c0_134] : memref<64x128xf32, #tpu.memory_space<vmem>>, vector<1x128xf32>
    %c67 = arith.constant 67 : index
    %c0_135 = arith.constant 0 : index
    %408 = vector.load %arg3[%c67, %c0_135] : memref<128x128xf32, #tpu.memory_space<vmem>>, vector<1x128xf32>
    tpu.vector_store %arg3[%c67, %c0_135], %407 {strides = array<i32>} : memref<128x128xf32, #tpu.memory_space<vmem>>, vector<1x128xf32>,
    %c68_i32 = arith.constant 68 : i32
    %409 = arith.addi %0, %c68_i32 : i32
    %410 = arith.index_cast %409 : i32 to index
    %411 = memref.load %arg1[%410] : memref<128xi32, #tpu.memory_space<smem>>
    %412 = arith.index_cast %411 : i32 to index
    %c0_136 = arith.constant 0 : index
    %413 = vector.load %arg2[%412, %c0_136] : memref<64x128xf32, #tpu.memory_space<vmem>>, vector<1x128xf32>
    %c68 = arith.constant 68 : index
    %c0_137 = arith.constant 0 : index
    %414 = vector.load %arg3[%c68, %c0_137] : memref<128x128xf32, #tpu.memory_space<vmem>>, vector<1x128xf32>
    tpu.vector_store %arg3[%c68, %c0_137], %413 {strides = array<i32>} : memref<128x128xf32, #tpu.memory_space<vmem>>, vector<1x128xf32>,
    %c69_i32 = arith.constant 69 : i32
    %415 = arith.addi %0, %c69_i32 : i32
    %416 = arith.index_cast %415 : i32 to index
    %417 = memref.load %arg1[%416] : memref<128xi32, #tpu.memory_space<smem>>
    %418 = arith.index_cast %417 : i32 to index
    %c0_138 = arith.constant 0 : index
    %419 = vector.load %arg2[%418, %c0_138] : memref<64x128xf32, #tpu.memory_space<vmem>>, vector<1x128xf32>
    %c69 = arith.constant 69 : index
    %c0_139 = arith.constant 0 : index
    %420 = vector.load %arg3[%c69, %c0_139] : memref<128x128xf32, #tpu.memory_space<vmem>>, vector<1x128xf32>
    tpu.vector_store %arg3[%c69, %c0_139], %419 {strides = array<i32>} : memref<128x128xf32, #tpu.memory_space<vmem>>, vector<1x128xf32>,
    %c70_i32 = arith.constant 70 : i32
    %421 = arith.addi %0, %c70_i32 : i32
    %422 = arith.index_cast %421 : i32 to index
    %423 = memref.load %arg1[%422] : memref<128xi32, #tpu.memory_space<smem>>
    %424 = arith.index_cast %423 : i32 to index
    %c0_140 = arith.constant 0 : index
    %425 = vector.load %arg2[%424, %c0_140] : memref<64x128xf32, #tpu.memory_space<vmem>>, vector<1x128xf32>
    %c70 = arith.constant 70 : index
    %c0_141 = arith.constant 0 : index
    %426 = vector.load %arg3[%c70, %c0_141] : memref<128x128xf32, #tpu.memory_space<vmem>>, vector<1x128xf32>
    tpu.vector_store %arg3[%c70, %c0_141], %425 {strides = array<i32>} : memref<128x128xf32, #tpu.memory_space<vmem>>, vector<1x128xf32>,
    %c71_i32 = arith.constant 71 : i32
    %427 = arith.addi %0, %c71_i32 : i32
    %428 = arith.index_cast %427 : i32 to index
    %429 = memref.load %arg1[%428] : memref<128xi32, #tpu.memory_space<smem>>
    %430 = arith.index_cast %429 : i32 to index
    %c0_142 = arith.constant 0 : index
    %431 = vector.load %arg2[%430, %c0_142] : memref<64x128xf32, #tpu.memory_space<vmem>>, vector<1x128xf32>
    %c71 = arith.constant 71 : index
    %c0_143 = arith.constant 0 : index
    %432 = vector.load %arg3[%c71, %c0_143] : memref<128x128xf32, #tpu.memory_space<vmem>>, vector<1x128xf32>
    tpu.vector_store %arg3[%c71, %c0_143], %431 {strides = array<i32>} : memref<128x128xf32, #tpu.memory_space<vmem>>, vector<1x128xf32>,
    %c72_i32 = arith.constant 72 : i32
    %433 = arith.addi %0, %c72_i32 : i32
    %434 = arith.index_cast %433 : i32 to index
    %435 = memref.load %arg1[%434] : memref<128xi32, #tpu.memory_space<smem>>
    %436 = arith.index_cast %435 : i32 to index
    %c0_144 = arith.constant 0 : index
    %437 = vector.load %arg2[%436, %c0_144] : memref<64x128xf32, #tpu.memory_space<vmem>>, vector<1x128xf32>
    %c72 = arith.constant 72 : index
    %c0_145 = arith.constant 0 : index
    %438 = vector.load %arg3[%c72, %c0_145] : memref<128x128xf32, #tpu.memory_space<vmem>>, vector<1x128xf32>
    tpu.vector_store %arg3[%c72, %c0_145], %437 {strides = array<i32>} : memref<128x128xf32, #tpu.memory_space<vmem>>, vector<1x128xf32>,
    %c73_i32 = arith.constant 73 : i32
    %439 = arith.addi %0, %c73_i32 : i32
    %440 = arith.index_cast %439 : i32 to index
    %441 = memref.load %arg1[%440] : memref<128xi32, #tpu.memory_space<smem>>
    %442 = arith.index_cast %441 : i32 to index
    %c0_146 = arith.constant 0 : index
    %443 = vector.load %arg2[%442, %c0_146] : memref<64x128xf32, #tpu.memory_space<vmem>>, vector<1x128xf32>
    %c73 = arith.constant 73 : index
    %c0_147 = arith.constant 0 : index
    %444 = vector.load %arg3[%c73, %c0_147] : memref<128x128xf32, #tpu.memory_space<vmem>>, vector<1x128xf32>
    tpu.vector_store %arg3[%c73, %c0_147], %443 {strides = array<i32>} : memref<128x128xf32, #tpu.memory_space<vmem>>, vector<1x128xf32>,
    %c74_i32 = arith.constant 74 : i32
    %445 = arith.addi %0, %c74_i32 : i32
    %446 = arith.index_cast %445 : i32 to index
    %447 = memref.load %arg1[%446] : memref<128xi32, #tpu.memory_space<smem>>
    %448 = arith.index_cast %447 : i32 to index
    %c0_148 = arith.constant 0 : index
    %449 = vector.load %arg2[%448, %c0_148] : memref<64x128xf32, #tpu.memory_space<vmem>>, vector<1x128xf32>
    %c74 = arith.constant 74 : index
    %c0_149 = arith.constant 0 : index
    %450 = vector.load %arg3[%c74, %c0_149] : memref<128x128xf32, #tpu.memory_space<vmem>>, vector<1x128xf32>
    tpu.vector_store %arg3[%c74, %c0_149], %449 {strides = array<i32>} : memref<128x128xf32, #tpu.memory_space<vmem>>, vector<1x128xf32>,
    %c75_i32 = arith.constant 75 : i32
    %451 = arith.addi %0, %c75_i32 : i32
    %452 = arith.index_cast %451 : i32 to index
    %453 = memref.load %arg1[%452] : memref<128xi32, #tpu.memory_space<smem>>
    %454 = arith.index_cast %453 : i32 to index
    %c0_150 = arith.constant 0 : index
    %455 = vector.load %arg2[%454, %c0_150] : memref<64x128xf32, #tpu.memory_space<vmem>>, vector<1x128xf32>
    %c75 = arith.constant 75 : index
    %c0_151 = arith.constant 0 : index
    %456 = vector.load %arg3[%c75, %c0_151] : memref<128x128xf32, #tpu.memory_space<vmem>>, vector<1x128xf32>
    tpu.vector_store %arg3[%c75, %c0_151], %455 {strides = array<i32>} : memref<128x128xf32, #tpu.memory_space<vmem>>, vector<1x128xf32>,
    %c76_i32 = arith.constant 76 : i32
    %457 = arith.addi %0, %c76_i32 : i32
    %458 = arith.index_cast %457 : i32 to index
    %459 = memref.load %arg1[%458] : memref<128xi32, #tpu.memory_space<smem>>
    %460 = arith.index_cast %459 : i32 to index
    %c0_152 = arith.constant 0 : index
    %461 = vector.load %arg2[%460, %c0_152] : memref<64x128xf32, #tpu.memory_space<vmem>>, vector<1x128xf32>
    %c76 = arith.constant 76 : index
    %c0_153 = arith.constant 0 : index
    %462 = vector.load %arg3[%c76, %c0_153] : memref<128x128xf32, #tpu.memory_space<vmem>>, vector<1x128xf32>
    tpu.vector_store %arg3[%c76, %c0_153], %461 {strides = array<i32>} : memref<128x128xf32, #tpu.memory_space<vmem>>, vector<1x128xf32>,
    %c77_i32 = arith.constant 77 : i32
    %463 = arith.addi %0, %c77_i32 : i32
    %464 = arith.index_cast %463 : i32 to index
    %465 = memref.load %arg1[%464] : memref<128xi32, #tpu.memory_space<smem>>
    %466 = arith.index_cast %465 : i32 to index
    %c0_154 = arith.constant 0 : index
    %467 = vector.load %arg2[%466, %c0_154] : memref<64x128xf32, #tpu.memory_space<vmem>>, vector<1x128xf32>
    %c77 = arith.constant 77 : index
    %c0_155 = arith.constant 0 : index
    %468 = vector.load %arg3[%c77, %c0_155] : memref<128x128xf32, #tpu.memory_space<vmem>>, vector<1x128xf32>
    tpu.vector_store %arg3[%c77, %c0_155], %467 {strides = array<i32>} : memref<128x128xf32, #tpu.memory_space<vmem>>, vector<1x128xf32>,
    %c78_i32 = arith.constant 78 : i32
    %469 = arith.addi %0, %c78_i32 : i32
    %470 = arith.index_cast %469 : i32 to index
    %471 = memref.load %arg1[%470] : memref<128xi32, #tpu.memory_space<smem>>
    %472 = arith.index_cast %471 : i32 to index
    %c0_156 = arith.constant 0 : index
    %473 = vector.load %arg2[%472, %c0_156] : memref<64x128xf32, #tpu.memory_space<vmem>>, vector<1x128xf32>
    %c78 = arith.constant 78 : index
    %c0_157 = arith.constant 0 : index
    %474 = vector.load %arg3[%c78, %c0_157] : memref<128x128xf32, #tpu.memory_space<vmem>>, vector<1x128xf32>
    tpu.vector_store %arg3[%c78, %c0_157], %473 {strides = array<i32>} : memref<128x128xf32, #tpu.memory_space<vmem>>, vector<1x128xf32>,
    %c79_i32 = arith.constant 79 : i32
    %475 = arith.addi %0, %c79_i32 : i32
    %476 = arith.index_cast %475 : i32 to index
    %477 = memref.load %arg1[%476] : memref<128xi32, #tpu.memory_space<smem>>
    %478 = arith.index_cast %477 : i32 to index
    %c0_158 = arith.constant 0 : index
    %479 = vector.load %arg2[%478, %c0_158] : memref<64x128xf32, #tpu.memory_space<vmem>>, vector<1x128xf32>
    %c79 = arith.constant 79 : index
    %c0_159 = arith.constant 0 : index
    %480 = vector.load %arg3[%c79, %c0_159] : memref<128x128xf32, #tpu.memory_space<vmem>>, vector<1x128xf32>
    tpu.vector_store %arg3[%c79, %c0_159], %479 {strides = array<i32>} : memref<128x128xf32, #tpu.memory_space<vmem>>, vector<1x128xf32>,
    %c80_i32 = arith.constant 80 : i32
    %481 = arith.addi %0, %c80_i32 : i32
    %482 = arith.index_cast %481 : i32 to index
    %483 = memref.load %arg1[%482] : memref<128xi32, #tpu.memory_space<smem>>
    %484 = arith.index_cast %483 : i32 to index
    %c0_160 = arith.constant 0 : index
    %485 = vector.load %arg2[%484, %c0_160] : memref<64x128xf32, #tpu.memory_space<vmem>>, vector<1x128xf32>
    %c80 = arith.constant 80 : index
    %c0_161 = arith.constant 0 : index
    %486 = vector.load %arg3[%c80, %c0_161] : memref<128x128xf32, #tpu.memory_space<vmem>>, vector<1x128xf32>
    tpu.vector_store %arg3[%c80, %c0_161], %485 {strides = array<i32>} : memref<128x128xf32, #tpu.memory_space<vmem>>, vector<1x128xf32>,
    %c81_i32 = arith.constant 81 : i32
    %487 = arith.addi %0, %c81_i32 : i32
    %488 = arith.index_cast %487 : i32 to index
    %489 = memref.load %arg1[%488] : memref<128xi32, #tpu.memory_space<smem>>
    %490 = arith.index_cast %489 : i32 to index
    %c0_162 = arith.constant 0 : index
    %491 = vector.load %arg2[%490, %c0_162] : memref<64x128xf32, #tpu.memory_space<vmem>>, vector<1x128xf32>
    %c81 = arith.constant 81 : index
    %c0_163 = arith.constant 0 : index
    %492 = vector.load %arg3[%c81, %c0_163] : memref<128x128xf32, #tpu.memory_space<vmem>>, vector<1x128xf32>
    tpu.vector_store %arg3[%c81, %c0_163], %491 {strides = array<i32>} : memref<128x128xf32, #tpu.memory_space<vmem>>, vector<1x128xf32>,
    %c82_i32 = arith.constant 82 : i32
    %493 = arith.addi %0, %c82_i32 : i32
    %494 = arith.index_cast %493 : i32 to index
    %495 = memref.load %arg1[%494] : memref<128xi32, #tpu.memory_space<smem>>
    %496 = arith.index_cast %495 : i32 to index
    %c0_164 = arith.constant 0 : index
    %497 = vector.load %arg2[%496, %c0_164] : memref<64x128xf32, #tpu.memory_space<vmem>>, vector<1x128xf32>
    %c82 = arith.constant 82 : index
    %c0_165 = arith.constant 0 : index
    %498 = vector.load %arg3[%c82, %c0_165] : memref<128x128xf32, #tpu.memory_space<vmem>>, vector<1x128xf32>
    tpu.vector_store %arg3[%c82, %c0_165], %497 {strides = array<i32>} : memref<128x128xf32, #tpu.memory_space<vmem>>, vector<1x128xf32>,
    %c83_i32 = arith.constant 83 : i32
    %499 = arith.addi %0, %c83_i32 : i32
    %500 = arith.index_cast %499 : i32 to index
    %501 = memref.load %arg1[%500] : memref<128xi32, #tpu.memory_space<smem>>
    %502 = arith.index_cast %501 : i32 to index
    %c0_166 = arith.constant 0 : index
    %503 = vector.load %arg2[%502, %c0_166] : memref<64x128xf32, #tpu.memory_space<vmem>>, vector<1x128xf32>
    %c83 = arith.constant 83 : index
    %c0_167 = arith.constant 0 : index
    %504 = vector.load %arg3[%c83, %c0_167] : memref<128x128xf32, #tpu.memory_space<vmem>>, vector<1x128xf32>
    tpu.vector_store %arg3[%c83, %c0_167], %503 {strides = array<i32>} : memref<128x128xf32, #tpu.memory_space<vmem>>, vector<1x128xf32>,
    %c84_i32 = arith.constant 84 : i32
    %505 = arith.addi %0, %c84_i32 : i32
    %506 = arith.index_cast %505 : i32 to index
    %507 = memref.load %arg1[%506] : memref<128xi32, #tpu.memory_space<smem>>
    %508 = arith.index_cast %507 : i32 to index
    %c0_168 = arith.constant 0 : index
    %509 = vector.load %arg2[%508, %c0_168] : memref<64x128xf32, #tpu.memory_space<vmem>>, vector<1x128xf32>
    %c84 = arith.constant 84 : index
    %c0_169 = arith.constant 0 : index
    %510 = vector.load %arg3[%c84, %c0_169] : memref<128x128xf32, #tpu.memory_space<vmem>>, vector<1x128xf32>
    tpu.vector_store %arg3[%c84, %c0_169], %509 {strides = array<i32>} : memref<128x128xf32, #tpu.memory_space<vmem>>, vector<1x128xf32>,
    %c85_i32 = arith.constant 85 : i32
    %511 = arith.addi %0, %c85_i32 : i32
    %512 = arith.index_cast %511 : i32 to index
    %513 = memref.load %arg1[%512] : memref<128xi32, #tpu.memory_space<smem>>
    %514 = arith.index_cast %513 : i32 to index
    %c0_170 = arith.constant 0 : index
    %515 = vector.load %arg2[%514, %c0_170] : memref<64x128xf32, #tpu.memory_space<vmem>>, vector<1x128xf32>
    %c85 = arith.constant 85 : index
    %c0_171 = arith.constant 0 : index
    %516 = vector.load %arg3[%c85, %c0_171] : memref<128x128xf32, #tpu.memory_space<vmem>>, vector<1x128xf32>
    tpu.vector_store %arg3[%c85, %c0_171], %515 {strides = array<i32>} : memref<128x128xf32, #tpu.memory_space<vmem>>, vector<1x128xf32>,
    %c86_i32 = arith.constant 86 : i32
    %517 = arith.addi %0, %c86_i32 : i32
    %518 = arith.index_cast %517 : i32 to index
    %519 = memref.load %arg1[%518] : memref<128xi32, #tpu.memory_space<smem>>
    %520 = arith.index_cast %519 : i32 to index
    %c0_172 = arith.constant 0 : index
    %521 = vector.load %arg2[%520, %c0_172] : memref<64x128xf32, #tpu.memory_space<vmem>>, vector<1x128xf32>
    %c86 = arith.constant 86 : index
    %c0_173 = arith.constant 0 : index
    %522 = vector.load %arg3[%c86, %c0_173] : memref<128x128xf32, #tpu.memory_space<vmem>>, vector<1x128xf32>
    tpu.vector_store %arg3[%c86, %c0_173], %521 {strides = array<i32>} : memref<128x128xf32, #tpu.memory_space<vmem>>, vector<1x128xf32>,
    %c87_i32 = arith.constant 87 : i32
    %523 = arith.addi %0, %c87_i32 : i32
    %524 = arith.index_cast %523 : i32 to index
    %525 = memref.load %arg1[%524] : memref<128xi32, #tpu.memory_space<smem>>
    %526 = arith.index_cast %525 : i32 to index
    %c0_174 = arith.constant 0 : index
    %527 = vector.load %arg2[%526, %c0_174] : memref<64x128xf32, #tpu.memory_space<vmem>>, vector<1x128xf32>
    %c87 = arith.constant 87 : index
    %c0_175 = arith.constant 0 : index
    %528 = vector.load %arg3[%c87, %c0_175] : memref<128x128xf32, #tpu.memory_space<vmem>>, vector<1x128xf32>
    tpu.vector_store %arg3[%c87, %c0_175], %527 {strides = array<i32>} : memref<128x128xf32, #tpu.memory_space<vmem>>, vector<1x128xf32>,
    %c88_i32 = arith.constant 88 : i32
    %529 = arith.addi %0, %c88_i32 : i32
    %530 = arith.index_cast %529 : i32 to index
    %531 = memref.load %arg1[%530] : memref<128xi32, #tpu.memory_space<smem>>
    %532 = arith.index_cast %531 : i32 to index
    %c0_176 = arith.constant 0 : index
    %533 = vector.load %arg2[%532, %c0_176] : memref<64x128xf32, #tpu.memory_space<vmem>>, vector<1x128xf32>
    %c88 = arith.constant 88 : index
    %c0_177 = arith.constant 0 : index
    %534 = vector.load %arg3[%c88, %c0_177] : memref<128x128xf32, #tpu.memory_space<vmem>>, vector<1x128xf32>
    tpu.vector_store %arg3[%c88, %c0_177], %533 {strides = array<i32>} : memref<128x128xf32, #tpu.memory_space<vmem>>, vector<1x128xf32>,
    %c89_i32 = arith.constant 89 : i32
    %535 = arith.addi %0, %c89_i32 : i32
    %536 = arith.index_cast %535 : i32 to index
    %537 = memref.load %arg1[%536] : memref<128xi32, #tpu.memory_space<smem>>
    %538 = arith.index_cast %537 : i32 to index
    %c0_178 = arith.constant 0 : index
    %539 = vector.load %arg2[%538, %c0_178] : memref<64x128xf32, #tpu.memory_space<vmem>>, vector<1x128xf32>
    %c89 = arith.constant 89 : index
    %c0_179 = arith.constant 0 : index
    %540 = vector.load %arg3[%c89, %c0_179] : memref<128x128xf32, #tpu.memory_space<vmem>>, vector<1x128xf32>
    tpu.vector_store %arg3[%c89, %c0_179], %539 {strides = array<i32>} : memref<128x128xf32, #tpu.memory_space<vmem>>, vector<1x128xf32>,
    %c90_i32 = arith.constant 90 : i32
    %541 = arith.addi %0, %c90_i32 : i32
    %542 = arith.index_cast %541 : i32 to index
    %543 = memref.load %arg1[%542] : memref<128xi32, #tpu.memory_space<smem>>
    %544 = arith.index_cast %543 : i32 to index
    %c0_180 = arith.constant 0 : index
    %545 = vector.load %arg2[%544, %c0_180] : memref<64x128xf32, #tpu.memory_space<vmem>>, vector<1x128xf32>
    %c90 = arith.constant 90 : index
    %c0_181 = arith.constant 0 : index
    %546 = vector.load %arg3[%c90, %c0_181] : memref<128x128xf32, #tpu.memory_space<vmem>>, vector<1x128xf32>
    tpu.vector_store %arg3[%c90, %c0_181], %545 {strides = array<i32>} : memref<128x128xf32, #tpu.memory_space<vmem>>, vector<1x128xf32>,
    %c91_i32 = arith.constant 91 : i32
    %547 = arith.addi %0, %c91_i32 : i32
    %548 = arith.index_cast %547 : i32 to index
    %549 = memref.load %arg1[%548] : memref<128xi32, #tpu.memory_space<smem>>
    %550 = arith.index_cast %549 : i32 to index
    %c0_182 = arith.constant 0 : index
    %551 = vector.load %arg2[%550, %c0_182] : memref<64x128xf32, #tpu.memory_space<vmem>>, vector<1x128xf32>
    %c91 = arith.constant 91 : index
    %c0_183 = arith.constant 0 : index
    %552 = vector.load %arg3[%c91, %c0_183] : memref<128x128xf32, #tpu.memory_space<vmem>>, vector<1x128xf32>
    tpu.vector_store %arg3[%c91, %c0_183], %551 {strides = array<i32>} : memref<128x128xf32, #tpu.memory_space<vmem>>, vector<1x128xf32>,
    %c92_i32 = arith.constant 92 : i32
    %553 = arith.addi %0, %c92_i32 : i32
    %554 = arith.index_cast %553 : i32 to index
    %555 = memref.load %arg1[%554] : memref<128xi32, #tpu.memory_space<smem>>
    %556 = arith.index_cast %555 : i32 to index
    %c0_184 = arith.constant 0 : index
    %557 = vector.load %arg2[%556, %c0_184] : memref<64x128xf32, #tpu.memory_space<vmem>>, vector<1x128xf32>
    %c92 = arith.constant 92 : index
    %c0_185 = arith.constant 0 : index
    %558 = vector.load %arg3[%c92, %c0_185] : memref<128x128xf32, #tpu.memory_space<vmem>>, vector<1x128xf32>
    tpu.vector_store %arg3[%c92, %c0_185], %557 {strides = array<i32>} : memref<128x128xf32, #tpu.memory_space<vmem>>, vector<1x128xf32>,
    %c93_i32 = arith.constant 93 : i32
    %559 = arith.addi %0, %c93_i32 : i32
    %560 = arith.index_cast %559 : i32 to index
    %561 = memref.load %arg1[%560] : memref<128xi32, #tpu.memory_space<smem>>
    %562 = arith.index_cast %561 : i32 to index
    %c0_186 = arith.constant 0 : index
    %563 = vector.load %arg2[%562, %c0_186] : memref<64x128xf32, #tpu.memory_space<vmem>>, vector<1x128xf32>
    %c93 = arith.constant 93 : index
    %c0_187 = arith.constant 0 : index
    %564 = vector.load %arg3[%c93, %c0_187] : memref<128x128xf32, #tpu.memory_space<vmem>>, vector<1x128xf32>
    tpu.vector_store %arg3[%c93, %c0_187], %563 {strides = array<i32>} : memref<128x128xf32, #tpu.memory_space<vmem>>, vector<1x128xf32>,
    %c94_i32 = arith.constant 94 : i32
    %565 = arith.addi %0, %c94_i32 : i32
    %566 = arith.index_cast %565 : i32 to index
    %567 = memref.load %arg1[%566] : memref<128xi32, #tpu.memory_space<smem>>
    %568 = arith.index_cast %567 : i32 to index
    %c0_188 = arith.constant 0 : index
    %569 = vector.load %arg2[%568, %c0_188] : memref<64x128xf32, #tpu.memory_space<vmem>>, vector<1x128xf32>
    %c94 = arith.constant 94 : index
    %c0_189 = arith.constant 0 : index
    %570 = vector.load %arg3[%c94, %c0_189] : memref<128x128xf32, #tpu.memory_space<vmem>>, vector<1x128xf32>
    tpu.vector_store %arg3[%c94, %c0_189], %569 {strides = array<i32>} : memref<128x128xf32, #tpu.memory_space<vmem>>, vector<1x128xf32>,
    %c95_i32 = arith.constant 95 : i32
    %571 = arith.addi %0, %c95_i32 : i32
    %572 = arith.index_cast %571 : i32 to index
    %573 = memref.load %arg1[%572] : memref<128xi32, #tpu.memory_space<smem>>
    %574 = arith.index_cast %573 : i32 to index
    %c0_190 = arith.constant 0 : index
    %575 = vector.load %arg2[%574, %c0_190] : memref<64x128xf32, #tpu.memory_space<vmem>>, vector<1x128xf32>
    %c95 = arith.constant 95 : index
    %c0_191 = arith.constant 0 : index
    %576 = vector.load %arg3[%c95, %c0_191] : memref<128x128xf32, #tpu.memory_space<vmem>>, vector<1x128xf32>
    tpu.vector_store %arg3[%c95, %c0_191], %575 {strides = array<i32>} : memref<128x128xf32, #tpu.memory_space<vmem>>, vector<1x128xf32>,
    %c96_i32 = arith.constant 96 : i32
    %577 = arith.addi %0, %c96_i32 : i32
    %578 = arith.index_cast %577 : i32 to index
    %579 = memref.load %arg1[%578] : memref<128xi32, #tpu.memory_space<smem>>
    %580 = arith.index_cast %579 : i32 to index
    %c0_192 = arith.constant 0 : index
    %581 = vector.load %arg2[%580, %c0_192] : memref<64x128xf32, #tpu.memory_space<vmem>>, vector<1x128xf32>
    %c96 = arith.constant 96 : index
    %c0_193 = arith.constant 0 : index
    %582 = vector.load %arg3[%c96, %c0_193] : memref<128x128xf32, #tpu.memory_space<vmem>>, vector<1x128xf32>
    tpu.vector_store %arg3[%c96, %c0_193], %581 {strides = array<i32>} : memref<128x128xf32, #tpu.memory_space<vmem>>, vector<1x128xf32>,
    %c97_i32 = arith.constant 97 : i32
    %583 = arith.addi %0, %c97_i32 : i32
    %584 = arith.index_cast %583 : i32 to index
    %585 = memref.load %arg1[%584] : memref<128xi32, #tpu.memory_space<smem>>
    %586 = arith.index_cast %585 : i32 to index
    %c0_194 = arith.constant 0 : index
    %587 = vector.load %arg2[%586, %c0_194] : memref<64x128xf32, #tpu.memory_space<vmem>>, vector<1x128xf32>
    %c97 = arith.constant 97 : index
    %c0_195 = arith.constant 0 : index
    %588 = vector.load %arg3[%c97, %c0_195] : memref<128x128xf32, #tpu.memory_space<vmem>>, vector<1x128xf32>
    tpu.vector_store %arg3[%c97, %c0_195], %587 {strides = array<i32>} : memref<128x128xf32, #tpu.memory_space<vmem>>, vector<1x128xf32>,
    %c98_i32 = arith.constant 98 : i32
    %589 = arith.addi %0, %c98_i32 : i32
    %590 = arith.index_cast %589 : i32 to index
    %591 = memref.load %arg1[%590] : memref<128xi32, #tpu.memory_space<smem>>
    %592 = arith.index_cast %591 : i32 to index
    %c0_196 = arith.constant 0 : index
    %593 = vector.load %arg2[%592, %c0_196] : memref<64x128xf32, #tpu.memory_space<vmem>>, vector<1x128xf32>
    %c98 = arith.constant 98 : index
    %c0_197 = arith.constant 0 : index
    %594 = vector.load %arg3[%c98, %c0_197] : memref<128x128xf32, #tpu.memory_space<vmem>>, vector<1x128xf32>
    tpu.vector_store %arg3[%c98, %c0_197], %593 {strides = array<i32>} : memref<128x128xf32, #tpu.memory_space<vmem>>, vector<1x128xf32>,
    %c99_i32 = arith.constant 99 : i32
    %595 = arith.addi %0, %c99_i32 : i32
    %596 = arith.index_cast %595 : i32 to index
    %597 = memref.load %arg1[%596] : memref<128xi32, #tpu.memory_space<smem>>
    %598 = arith.index_cast %597 : i32 to index
    %c0_198 = arith.constant 0 : index
    %599 = vector.load %arg2[%598, %c0_198] : memref<64x128xf32, #tpu.memory_space<vmem>>, vector<1x128xf32>
    %c99 = arith.constant 99 : index
    %c0_199 = arith.constant 0 : index
    %600 = vector.load %arg3[%c99, %c0_199] : memref<128x128xf32, #tpu.memory_space<vmem>>, vector<1x128xf32>
    tpu.vector_store %arg3[%c99, %c0_199], %599 {strides = array<i32>} : memref<128x128xf32, #tpu.memory_space<vmem>>, vector<1x128xf32>,
    %c100_i32 = arith.constant 100 : i32
    %601 = arith.addi %0, %c100_i32 : i32
    %602 = arith.index_cast %601 : i32 to index
    %603 = memref.load %arg1[%602] : memref<128xi32, #tpu.memory_space<smem>>
    %604 = arith.index_cast %603 : i32 to index
    %c0_200 = arith.constant 0 : index
    %605 = vector.load %arg2[%604, %c0_200] : memref<64x128xf32, #tpu.memory_space<vmem>>, vector<1x128xf32>
    %c100 = arith.constant 100 : index
    %c0_201 = arith.constant 0 : index
    %606 = vector.load %arg3[%c100, %c0_201] : memref<128x128xf32, #tpu.memory_space<vmem>>, vector<1x128xf32>
    tpu.vector_store %arg3[%c100, %c0_201], %605 {strides = array<i32>} : memref<128x128xf32, #tpu.memory_space<vmem>>, vector<1x128xf32>,
    %c101_i32 = arith.constant 101 : i32
    %607 = arith.addi %0, %c101_i32 : i32
    %608 = arith.index_cast %607 : i32 to index
    %609 = memref.load %arg1[%608] : memref<128xi32, #tpu.memory_space<smem>>
    %610 = arith.index_cast %609 : i32 to index
    %c0_202 = arith.constant 0 : index
    %611 = vector.load %arg2[%610, %c0_202] : memref<64x128xf32, #tpu.memory_space<vmem>>, vector<1x128xf32>
    %c101 = arith.constant 101 : index
    %c0_203 = arith.constant 0 : index
    %612 = vector.load %arg3[%c101, %c0_203] : memref<128x128xf32, #tpu.memory_space<vmem>>, vector<1x128xf32>
    tpu.vector_store %arg3[%c101, %c0_203], %611 {strides = array<i32>} : memref<128x128xf32, #tpu.memory_space<vmem>>, vector<1x128xf32>,
    %c102_i32 = arith.constant 102 : i32
    %613 = arith.addi %0, %c102_i32 : i32
    %614 = arith.index_cast %613 : i32 to index
    %615 = memref.load %arg1[%614] : memref<128xi32, #tpu.memory_space<smem>>
    %616 = arith.index_cast %615 : i32 to index
    %c0_204 = arith.constant 0 : index
    %617 = vector.load %arg2[%616, %c0_204] : memref<64x128xf32, #tpu.memory_space<vmem>>, vector<1x128xf32>
    %c102 = arith.constant 102 : index
    %c0_205 = arith.constant 0 : index
    %618 = vector.load %arg3[%c102, %c0_205] : memref<128x128xf32, #tpu.memory_space<vmem>>, vector<1x128xf32>
    tpu.vector_store %arg3[%c102, %c0_205], %617 {strides = array<i32>} : memref<128x128xf32, #tpu.memory_space<vmem>>, vector<1x128xf32>,
    %c103_i32 = arith.constant 103 : i32
    %619 = arith.addi %0, %c103_i32 : i32
    %620 = arith.index_cast %619 : i32 to index
    %621 = memref.load %arg1[%620] : memref<128xi32, #tpu.memory_space<smem>>
    %622 = arith.index_cast %621 : i32 to index
    %c0_206 = arith.constant 0 : index
    %623 = vector.load %arg2[%622, %c0_206] : memref<64x128xf32, #tpu.memory_space<vmem>>, vector<1x128xf32>
    %c103 = arith.constant 103 : index
    %c0_207 = arith.constant 0 : index
    %624 = vector.load %arg3[%c103, %c0_207] : memref<128x128xf32, #tpu.memory_space<vmem>>, vector<1x128xf32>
    tpu.vector_store %arg3[%c103, %c0_207], %623 {strides = array<i32>} : memref<128x128xf32, #tpu.memory_space<vmem>>, vector<1x128xf32>,
    %c104_i32 = arith.constant 104 : i32
    %625 = arith.addi %0, %c104_i32 : i32
    %626 = arith.index_cast %625 : i32 to index
    %627 = memref.load %arg1[%626] : memref<128xi32, #tpu.memory_space<smem>>
    %628 = arith.index_cast %627 : i32 to index
    %c0_208 = arith.constant 0 : index
    %629 = vector.load %arg2[%628, %c0_208] : memref<64x128xf32, #tpu.memory_space<vmem>>, vector<1x128xf32>
    %c104 = arith.constant 104 : index
    %c0_209 = arith.constant 0 : index
    %630 = vector.load %arg3[%c104, %c0_209] : memref<128x128xf32, #tpu.memory_space<vmem>>, vector<1x128xf32>
    tpu.vector_store %arg3[%c104, %c0_209], %629 {strides = array<i32>} : memref<128x128xf32, #tpu.memory_space<vmem>>, vector<1x128xf32>,
    %c105_i32 = arith.constant 105 : i32
    %631 = arith.addi %0, %c105_i32 : i32
    %632 = arith.index_cast %631 : i32 to index
    %633 = memref.load %arg1[%632] : memref<128xi32, #tpu.memory_space<smem>>
    %634 = arith.index_cast %633 : i32 to index
    %c0_210 = arith.constant 0 : index
    %635 = vector.load %arg2[%634, %c0_210] : memref<64x128xf32, #tpu.memory_space<vmem>>, vector<1x128xf32>
    %c105 = arith.constant 105 : index
    %c0_211 = arith.constant 0 : index
    %636 = vector.load %arg3[%c105, %c0_211] : memref<128x128xf32, #tpu.memory_space<vmem>>, vector<1x128xf32>
    tpu.vector_store %arg3[%c105, %c0_211], %635 {strides = array<i32>} : memref<128x128xf32, #tpu.memory_space<vmem>>, vector<1x128xf32>,
    %c106_i32 = arith.constant 106 : i32
    %637 = arith.addi %0, %c106_i32 : i32
    %638 = arith.index_cast %637 : i32 to index
    %639 = memref.load %arg1[%638] : memref<128xi32, #tpu.memory_space<smem>>
    %640 = arith.index_cast %639 : i32 to index
    %c0_212 = arith.constant 0 : index
    %641 = vector.load %arg2[%640, %c0_212] : memref<64x128xf32, #tpu.memory_space<vmem>>, vector<1x128xf32>
    %c106 = arith.constant 106 : index
    %c0_213 = arith.constant 0 : index
    %642 = vector.load %arg3[%c106, %c0_213] : memref<128x128xf32, #tpu.memory_space<vmem>>, vector<1x128xf32>
    tpu.vector_store %arg3[%c106, %c0_213], %641 {strides = array<i32>} : memref<128x128xf32, #tpu.memory_space<vmem>>, vector<1x128xf32>,
    %c107_i32 = arith.constant 107 : i32
    %643 = arith.addi %0, %c107_i32 : i32
    %644 = arith.index_cast %643 : i32 to index
    %645 = memref.load %arg1[%644] : memref<128xi32, #tpu.memory_space<smem>>
    %646 = arith.index_cast %645 : i32 to index
    %c0_214 = arith.constant 0 : index
    %647 = vector.load %arg2[%646, %c0_214] : memref<64x128xf32, #tpu.memory_space<vmem>>, vector<1x128xf32>
    %c107 = arith.constant 107 : index
    %c0_215 = arith.constant 0 : index
    %648 = vector.load %arg3[%c107, %c0_215] : memref<128x128xf32, #tpu.memory_space<vmem>>, vector<1x128xf32>
    tpu.vector_store %arg3[%c107, %c0_215], %647 {strides = array<i32>} : memref<128x128xf32, #tpu.memory_space<vmem>>, vector<1x128xf32>,
    %c108_i32 = arith.constant 108 : i32
    %649 = arith.addi %0, %c108_i32 : i32
    %650 = arith.index_cast %649 : i32 to index
    %651 = memref.load %arg1[%650] : memref<128xi32, #tpu.memory_space<smem>>
    %652 = arith.index_cast %651 : i32 to index
    %c0_216 = arith.constant 0 : index
    %653 = vector.load %arg2[%652, %c0_216] : memref<64x128xf32, #tpu.memory_space<vmem>>, vector<1x128xf32>
    %c108 = arith.constant 108 : index
    %c0_217 = arith.constant 0 : index
    %654 = vector.load %arg3[%c108, %c0_217] : memref<128x128xf32, #tpu.memory_space<vmem>>, vector<1x128xf32>
    tpu.vector_store %arg3[%c108, %c0_217], %653 {strides = array<i32>} : memref<128x128xf32, #tpu.memory_space<vmem>>, vector<1x128xf32>,
    %c109_i32 = arith.constant 109 : i32
    %655 = arith.addi %0, %c109_i32 : i32
    %656 = arith.index_cast %655 : i32 to index
    %657 = memref.load %arg1[%656] : memref<128xi32, #tpu.memory_space<smem>>
    %658 = arith.index_cast %657 : i32 to index
    %c0_218 = arith.constant 0 : index
    %659 = vector.load %arg2[%658, %c0_218] : memref<64x128xf32, #tpu.memory_space<vmem>>, vector<1x128xf32>
    %c109 = arith.constant 109 : index
    %c0_219 = arith.constant 0 : index
    %660 = vector.load %arg3[%c109, %c0_219] : memref<128x128xf32, #tpu.memory_space<vmem>>, vector<1x128xf32>
    tpu.vector_store %arg3[%c109, %c0_219], %659 {strides = array<i32>} : memref<128x128xf32, #tpu.memory_space<vmem>>, vector<1x128xf32>,
    %c110_i32 = arith.constant 110 : i32
    %661 = arith.addi %0, %c110_i32 : i32
    %662 = arith.index_cast %661 : i32 to index
    %663 = memref.load %arg1[%662] : memref<128xi32, #tpu.memory_space<smem>>
    %664 = arith.index_cast %663 : i32 to index
    %c0_220 = arith.constant 0 : index
    %665 = vector.load %arg2[%664, %c0_220] : memref<64x128xf32, #tpu.memory_space<vmem>>, vector<1x128xf32>
    %c110 = arith.constant 110 : index
    %c0_221 = arith.constant 0 : index
    %666 = vector.load %arg3[%c110, %c0_221] : memref<128x128xf32, #tpu.memory_space<vmem>>, vector<1x128xf32>
    tpu.vector_store %arg3[%c110, %c0_221], %665 {strides = array<i32>} : memref<128x128xf32, #tpu.memory_space<vmem>>, vector<1x128xf32>,
    %c111_i32 = arith.constant 111 : i32
    %667 = arith.addi %0, %c111_i32 : i32
    %668 = arith.index_cast %667 : i32 to index
    %669 = memref.load %arg1[%668] : memref<128xi32, #tpu.memory_space<smem>>
    %670 = arith.index_cast %669 : i32 to index
    %c0_222 = arith.constant 0 : index
    %671 = vector.load %arg2[%670, %c0_222] : memref<64x128xf32, #tpu.memory_space<vmem>>, vector<1x128xf32>
    %c111 = arith.constant 111 : index
    %c0_223 = arith.constant 0 : index
    %672 = vector.load %arg3[%c111, %c0_223] : memref<128x128xf32, #tpu.memory_space<vmem>>, vector<1x128xf32>
    tpu.vector_store %arg3[%c111, %c0_223], %671 {strides = array<i32>} : memref<128x128xf32, #tpu.memory_space<vmem>>, vector<1x128xf32>,
    %c112_i32 = arith.constant 112 : i32
    %673 = arith.addi %0, %c112_i32 : i32
    %674 = arith.index_cast %673 : i32 to index
    %675 = memref.load %arg1[%674] : memref<128xi32, #tpu.memory_space<smem>>
    %676 = arith.index_cast %675 : i32 to index
    %c0_224 = arith.constant 0 : index
    %677 = vector.load %arg2[%676, %c0_224] : memref<64x128xf32, #tpu.memory_space<vmem>>, vector<1x128xf32>
    %c112 = arith.constant 112 : index
    %c0_225 = arith.constant 0 : index
    %678 = vector.load %arg3[%c112, %c0_225] : memref<128x128xf32, #tpu.memory_space<vmem>>, vector<1x128xf32>
    tpu.vector_store %arg3[%c112, %c0_225], %677 {strides = array<i32>} : memref<128x128xf32, #tpu.memory_space<vmem>>, vector<1x128xf32>,
    %c113_i32 = arith.constant 113 : i32
    %679 = arith.addi %0, %c113_i32 : i32
    %680 = arith.index_cast %679 : i32 to index
    %681 = memref.load %arg1[%680] : memref<128xi32, #tpu.memory_space<smem>>
    %682 = arith.index_cast %681 : i32 to index
    %c0_226 = arith.constant 0 : index
    %683 = vector.load %arg2[%682, %c0_226] : memref<64x128xf32, #tpu.memory_space<vmem>>, vector<1x128xf32>
    %c113 = arith.constant 113 : index
    %c0_227 = arith.constant 0 : index
    %684 = vector.load %arg3[%c113, %c0_227] : memref<128x128xf32, #tpu.memory_space<vmem>>, vector<1x128xf32>
    tpu.vector_store %arg3[%c113, %c0_227], %683 {strides = array<i32>} : memref<128x128xf32, #tpu.memory_space<vmem>>, vector<1x128xf32>,
    %c114_i32 = arith.constant 114 : i32
    %685 = arith.addi %0, %c114_i32 : i32
    %686 = arith.index_cast %685 : i32 to index
    %687 = memref.load %arg1[%686] : memref<128xi32, #tpu.memory_space<smem>>
    %688 = arith.index_cast %687 : i32 to index
    %c0_228 = arith.constant 0 : index
    %689 = vector.load %arg2[%688, %c0_228] : memref<64x128xf32, #tpu.memory_space<vmem>>, vector<1x128xf32>
    %c114 = arith.constant 114 : index
    %c0_229 = arith.constant 0 : index
    %690 = vector.load %arg3[%c114, %c0_229] : memref<128x128xf32, #tpu.memory_space<vmem>>, vector<1x128xf32>
    tpu.vector_store %arg3[%c114, %c0_229], %689 {strides = array<i32>} : memref<128x128xf32, #tpu.memory_space<vmem>>, vector<1x128xf32>,
    %c115_i32 = arith.constant 115 : i32
    %691 = arith.addi %0, %c115_i32 : i32
    %692 = arith.index_cast %691 : i32 to index
    %693 = memref.load %arg1[%692] : memref<128xi32, #tpu.memory_space<smem>>
    %694 = arith.index_cast %693 : i32 to index
    %c0_230 = arith.constant 0 : index
    %695 = vector.load %arg2[%694, %c0_230] : memref<64x128xf32, #tpu.memory_space<vmem>>, vector<1x128xf32>
    %c115 = arith.constant 115 : index
    %c0_231 = arith.constant 0 : index
    %696 = vector.load %arg3[%c115, %c0_231] : memref<128x128xf32, #tpu.memory_space<vmem>>, vector<1x128xf32>
    tpu.vector_store %arg3[%c115, %c0_231], %695 {strides = array<i32>} : memref<128x128xf32, #tpu.memory_space<vmem>>, vector<1x128xf32>,
    %c116_i32 = arith.constant 116 : i32
    %697 = arith.addi %0, %c116_i32 : i32
    %698 = arith.index_cast %697 : i32 to index
    %699 = memref.load %arg1[%698] : memref<128xi32, #tpu.memory_space<smem>>
    %700 = arith.index_cast %699 : i32 to index
    %c0_232 = arith.constant 0 : index
    %701 = vector.load %arg2[%700, %c0_232] : memref<64x128xf32, #tpu.memory_space<vmem>>, vector<1x128xf32>
    %c116 = arith.constant 116 : index
    %c0_233 = arith.constant 0 : index
    %702 = vector.load %arg3[%c116, %c0_233] : memref<128x128xf32, #tpu.memory_space<vmem>>, vector<1x128xf32>
    tpu.vector_store %arg3[%c116, %c0_233], %701 {strides = array<i32>} : memref<128x128xf32, #tpu.memory_space<vmem>>, vector<1x128xf32>,
    %c117_i32 = arith.constant 117 : i32
    %703 = arith.addi %0, %c117_i32 : i32
    %704 = arith.index_cast %703 : i32 to index
    %705 = memref.load %arg1[%704] : memref<128xi32, #tpu.memory_space<smem>>
    %706 = arith.index_cast %705 : i32 to index
    %c0_234 = arith.constant 0 : index
    %707 = vector.load %arg2[%706, %c0_234] : memref<64x128xf32, #tpu.memory_space<vmem>>, vector<1x128xf32>
    %c117 = arith.constant 117 : index
    %c0_235 = arith.constant 0 : index
    %708 = vector.load %arg3[%c117, %c0_235] : memref<128x128xf32, #tpu.memory_space<vmem>>, vector<1x128xf32>
    tpu.vector_store %arg3[%c117, %c0_235], %707 {strides = array<i32>} : memref<128x128xf32, #tpu.memory_space<vmem>>, vector<1x128xf32>,
    %c118_i32 = arith.constant 118 : i32
    %709 = arith.addi %0, %c118_i32 : i32
    %710 = arith.index_cast %709 : i32 to index
    %711 = memref.load %arg1[%710] : memref<128xi32, #tpu.memory_space<smem>>
    %712 = arith.index_cast %711 : i32 to index
    %c0_236 = arith.constant 0 : index
    %713 = vector.load %arg2[%712, %c0_236] : memref<64x128xf32, #tpu.memory_space<vmem>>, vector<1x128xf32>
    %c118 = arith.constant 118 : index
    %c0_237 = arith.constant 0 : index
    %714 = vector.load %arg3[%c118, %c0_237] : memref<128x128xf32, #tpu.memory_space<vmem>>, vector<1x128xf32>
    tpu.vector_store %arg3[%c118, %c0_237], %713 {strides = array<i32>} : memref<128x128xf32, #tpu.memory_space<vmem>>, vector<1x128xf32>,
    %c119_i32 = arith.constant 119 : i32
    %715 = arith.addi %0, %c119_i32 : i32
    %716 = arith.index_cast %715 : i32 to index
    %717 = memref.load %arg1[%716] : memref<128xi32, #tpu.memory_space<smem>>
    %718 = arith.index_cast %717 : i32 to index
    %c0_238 = arith.constant 0 : index
    %719 = vector.load %arg2[%718, %c0_238] : memref<64x128xf32, #tpu.memory_space<vmem>>, vector<1x128xf32>
    %c119 = arith.constant 119 : index
    %c0_239 = arith.constant 0 : index
    %720 = vector.load %arg3[%c119, %c0_239] : memref<128x128xf32, #tpu.memory_space<vmem>>, vector<1x128xf32>
    tpu.vector_store %arg3[%c119, %c0_239], %719 {strides = array<i32>} : memref<128x128xf32, #tpu.memory_space<vmem>>, vector<1x128xf32>,
    %c120_i32 = arith.constant 120 : i32
    %721 = arith.addi %0, %c120_i32 : i32
    %722 = arith.index_cast %721 : i32 to index
    %723 = memref.load %arg1[%722] : memref<128xi32, #tpu.memory_space<smem>>
    %724 = arith.index_cast %723 : i32 to index
    %c0_240 = arith.constant 0 : index
    %725 = vector.load %arg2[%724, %c0_240] : memref<64x128xf32, #tpu.memory_space<vmem>>, vector<1x128xf32>
    %c120 = arith.constant 120 : index
    %c0_241 = arith.constant 0 : index
    %726 = vector.load %arg3[%c120, %c0_241] : memref<128x128xf32, #tpu.memory_space<vmem>>, vector<1x128xf32>
    tpu.vector_store %arg3[%c120, %c0_241], %725 {strides = array<i32>} : memref<128x128xf32, #tpu.memory_space<vmem>>, vector<1x128xf32>,
    %c121_i32 = arith.constant 121 : i32
    %727 = arith.addi %0, %c121_i32 : i32
    %728 = arith.index_cast %727 : i32 to index
    %729 = memref.load %arg1[%728] : memref<128xi32, #tpu.memory_space<smem>>
    %730 = arith.index_cast %729 : i32 to index
    %c0_242 = arith.constant 0 : index
    %731 = vector.load %arg2[%730, %c0_242] : memref<64x128xf32, #tpu.memory_space<vmem>>, vector<1x128xf32>
    %c121 = arith.constant 121 : index
    %c0_243 = arith.constant 0 : index
    %732 = vector.load %arg3[%c121, %c0_243] : memref<128x128xf32, #tpu.memory_space<vmem>>, vector<1x128xf32>
    tpu.vector_store %arg3[%c121, %c0_243], %731 {strides = array<i32>} : memref<128x128xf32, #tpu.memory_space<vmem>>, vector<1x128xf32>,
    %c122_i32 = arith.constant 122 : i32
    %733 = arith.addi %0, %c122_i32 : i32
    %734 = arith.index_cast %733 : i32 to index
    %735 = memref.load %arg1[%734] : memref<128xi32, #tpu.memory_space<smem>>
    %736 = arith.index_cast %735 : i32 to index
    %c0_244 = arith.constant 0 : index
    %737 = vector.load %arg2[%736, %c0_244] : memref<64x128xf32, #tpu.memory_space<vmem>>, vector<1x128xf32>
    %c122 = arith.constant 122 : index
    %c0_245 = arith.constant 0 : index
    %738 = vector.load %arg3[%c122, %c0_245] : memref<128x128xf32, #tpu.memory_space<vmem>>, vector<1x128xf32>
    tpu.vector_store %arg3[%c122, %c0_245], %737 {strides = array<i32>} : memref<128x128xf32, #tpu.memory_space<vmem>>, vector<1x128xf32>,
    %c123_i32 = arith.constant 123 : i32
    %739 = arith.addi %0, %c123_i32 : i32
    %740 = arith.index_cast %739 : i32 to index
    %741 = memref.load %arg1[%740] : memref<128xi32, #tpu.memory_space<smem>>
    %742 = arith.index_cast %741 : i32 to index
    %c0_246 = arith.constant 0 : index
    %743 = vector.load %arg2[%742, %c0_246] : memref<64x128xf32, #tpu.memory_space<vmem>>, vector<1x128xf32>
    %c123 = arith.constant 123 : index
    %c0_247 = arith.constant 0 : index
    %744 = vector.load %arg3[%c123, %c0_247] : memref<128x128xf32, #tpu.memory_space<vmem>>, vector<1x128xf32>
    tpu.vector_store %arg3[%c123, %c0_247], %743 {strides = array<i32>} : memref<128x128xf32, #tpu.memory_space<vmem>>, vector<1x128xf32>,
    %c124_i32 = arith.constant 124 : i32
    %745 = arith.addi %0, %c124_i32 : i32
    %746 = arith.index_cast %745 : i32 to index
    %747 = memref.load %arg1[%746] : memref<128xi32, #tpu.memory_space<smem>>
    %748 = arith.index_cast %747 : i32 to index
    %c0_248 = arith.constant 0 : index
    %749 = vector.load %arg2[%748, %c0_248] : memref<64x128xf32, #tpu.memory_space<vmem>>, vector<1x128xf32>
    %c124 = arith.constant 124 : index
    %c0_249 = arith.constant 0 : index
    %750 = vector.load %arg3[%c124, %c0_249] : memref<128x128xf32, #tpu.memory_space<vmem>>, vector<1x128xf32>
    tpu.vector_store %arg3[%c124, %c0_249], %749 {strides = array<i32>} : memref<128x128xf32, #tpu.memory_space<vmem>>, vector<1x128xf32>,
    %c125_i32 = arith.constant 125 : i32
    %751 = arith.addi %0, %c125_i32 : i32
    %752 = arith.index_cast %751 : i32 to index
    %753 = memref.load %arg1[%752] : memref<128xi32, #tpu.memory_space<smem>>
    %754 = arith.index_cast %753 : i32 to index
    %c0_250 = arith.constant 0 : index
    %755 = vector.load %arg2[%754, %c0_250] : memref<64x128xf32, #tpu.memory_space<vmem>>, vector<1x128xf32>
    %c125 = arith.constant 125 : index
    %c0_251 = arith.constant 0 : index
    %756 = vector.load %arg3[%c125, %c0_251] : memref<128x128xf32, #tpu.memory_space<vmem>>, vector<1x128xf32>
    tpu.vector_store %arg3[%c125, %c0_251], %755 {strides = array<i32>} : memref<128x128xf32, #tpu.memory_space<vmem>>, vector<1x128xf32>,
    %c126_i32 = arith.constant 126 : i32
    %757 = arith.addi %0, %c126_i32 : i32
    %758 = arith.index_cast %757 : i32 to index
    %759 = memref.load %arg1[%758] : memref<128xi32, #tpu.memory_space<smem>>
    %760 = arith.index_cast %759 : i32 to index
    %c0_252 = arith.constant 0 : index
    %761 = vector.load %arg2[%760, %c0_252] : memref<64x128xf32, #tpu.memory_space<vmem>>, vector<1x128xf32>
    %c126 = arith.constant 126 : index
    %c0_253 = arith.constant 0 : index
    %762 = vector.load %arg3[%c126, %c0_253] : memref<128x128xf32, #tpu.memory_space<vmem>>, vector<1x128xf32>
    tpu.vector_store %arg3[%c126, %c0_253], %761 {strides = array<i32>} : memref<128x128xf32, #tpu.memory_space<vmem>>, vector<1x128xf32>,
    %c127_i32 = arith.constant 127 : i32
    %763 = arith.addi %0, %c127_i32 : i32
    %764 = arith.index_cast %763 : i32 to index
    %765 = memref.load %arg1[%764] : memref<128xi32, #tpu.memory_space<smem>>
    %766 = arith.index_cast %765 : i32 to index
    %c0_254 = arith.constant 0 : index
    %767 = vector.load %arg2[%766, %c0_254] : memref<64x128xf32, #tpu.memory_space<vmem>>, vector<1x128xf32>
    %c127 = arith.constant 127 : index
    %c0_255 = arith.constant 0 : index
    %768 = vector.load %arg3[%c127, %c0_255] : memref<128x128xf32, #tpu.memory_space<vmem>>, vector<1x128xf32>
    tpu.vector_store %arg3[%c127, %c0_255], %767 {strides = array<i32>} : memref<128x128xf32, #tpu.memory_space<vmem>>, vector<1x128xf32>,
    return
  }
  func.func @transform_0(%arg0: i32, %arg1: memref<128xi32, #tpu.memory_space<smem>>) -> (i32, i32) {
    %c0_i32 = arith.constant 0 : i32
    %c0_i32_0 = arith.constant 0 : i32
    %c0_i32_1 = arith.constant 0 : i32
    return %c0_i32, %c0_i32_0 : i32, i32
  }
  func.func @transform_1(%arg0: i32, %arg1: memref<128xi32, #tpu.memory_space<smem>>) -> (i32, i32) {
    %c0_i32 = arith.constant 0 : i32
    %c0_i32_0 = arith.constant 0 : i32
    return %arg0, %c0_i32 : i32, i32
  }
}

</mosaic_0001>

<llo_original>
// kernel: tpu_custom_call.1
$region0: #{tpu_custom_call.1}
  #allocation0 [shape = 'u32[]', space=smem, size = 0x4, offset = 0x4, fixed_abs, tag = 'smem constant byte address 0x4 - core index']
  #allocation1 [shape = 'u32[72,128]{1,0:T(1,128)}', space=vmem, size = 0x9000, scoped, tag = 'internal scratch']
  #allocation2 [shape = 's32[1]{0}', space=sflag, size = 0x4, scoped, tag = 'scoped memory for tpu_custom_call.1']
  #allocation3 [shape = 'u8[512]{0}', space=smem, size = 0x200, scoped, tag = 'prefetched SMEM operand 0']
  %s0 = inlined_call_operand.hbm [shape: s32[128], index: 0, kind: input, shape index: {}]
  %s1 = inlined_call_operand.hbm [shape: f32[64,128], index: 1, kind: input, shape index: {}]
  %s2 = inlined_call_operand.hbm [shape: f32[128,128], index: 2, kind: output, shape index: {}]
  %s3 = sld [smem:[#allocation0]]
  $region18: #{tpu_custom_call.1} parent=0
    _
  %s5 = ssub.s32 1, %s3
  %s6 = scalar_select 0, %s5, %s3
  %s8 = sshll.u32 %s0, 4
  %s9 = int_to_ptr.hbm [resolvable:$true] %s8
  %11 = dma.hbm_to_smem %s9, 16, [#allocation3], [#allocation2]
  %13 = dma.done [#allocation2], 16
  %14 = sfence
  $region1: #{tpu_custom_call.1} parent=0
    #allocation4 [shape = 'u8[32768]{0}', space=vmem, size = 0x8000, scoped, tag = 'input window, operand 1, single buffered']
    #allocation5 [shape = 's32[1]{0}', space=sflag, size = 0x4, scoped, tag = 'scoped memory for tpu_custom_call.1']
    #allocation6 [shape = 's32[1]{0}', space=sflag, size = 0x4, scoped, tag = 'scoped memory for tpu_custom_call.1']
    #allocation7 [shape = 'u8[65536]{0}', space=vmem, size = 0x10000, scoped, tag = 'output window, operand 0, single buffered']
    %15 = vsyncpa [#allocation5], 0
    %16 = vsyncpa [#allocation6], 0
    // Predicated region
    $region2: #{tpu_custom_call.1} parent=1 // pred_check
      _
    $region3: #{tpu_custom_call.1} parent=1 // pred_check_branch
      %18 = sbr.rel (0) target = $region5
    $region4: #{tpu_custom_call.1} parent=1 // pred_region
      %20 = vsyncadd [#allocation5], 0
      %s21 = sshll.u32 %s1, 4
      %s22 = int_to_ptr.hbm [resolvable:$true] %s21
      %s23 = sshll.u32 [#allocation4], 4
      %s24 = int_to_ptr.vmem [resolvable:$true] %s23
      %29 = dma.hbm_to_vmem [thread:$0]  %s22, 1024, %s24, [#allocation5], 128, 128, 8
    $region5: #{tpu_custom_call.1} parent=1 // pred_fallthru
      _
    // Predicated region
    $region6: #{tpu_custom_call.1} parent=1 // pred_check
      _
    $region7: #{tpu_custom_call.1} parent=1 // pred_check_branch
      %31 = sbr.rel (0) target = $region9
    $region8: #{tpu_custom_call.1} parent=1 // pred_region
      %33 = dma.done [#allocation5], 1024
    $region9: #{tpu_custom_call.1} parent=1 // pred_fallthru
      _
    %s34 = smul.u32 0, 128
    %s35 = sld [smem:[#allocation3 + %s34]]
    %s36 = scalar_lea.vmem [#allocation4], %s35
    %v37 = vld [vmem:[%s36] sm:$0x1]
    %38 = vst [vmem:[#allocation7] sm:$0x1] %v37
    %s39 = sadd.s32 %s34, 1
    %s40 = sld [smem:[#allocation3 + %s39]]
    %s41 = scalar_lea.vmem [#allocation4], %s40
    %v42 = vld [vmem:[%s41] sm:$0x1]
    %43 = vst [vmem:[#allocation7 + $0x1] sm:$0x1] %v42
    %s44 = sadd.s32 %s34, 2
    %s45 = sld [smem:[#allocation3 + %s44]]
    %s46 = scalar_lea.vmem [#allocation4], %s45
    %v47 = vld [vmem:[%s46] sm:$0x1]
    %48 = vst [vmem:[#allocation7 + $0x2] sm:$0x1] %v47
    %s49 = sadd.s32 %s34, 3
    %s50 = sld [smem:[#allocation3 + %s49]]
    %s51 = scalar_lea.vmem [#allocation4], %s50
    %v52 = vld [vmem:[%s51] sm:$0x1]
    %53 = vst [vmem:[#allocation7 + $0x3] sm:$0x1] %v52
    %s54 = sadd.s32 %s34, 4
    %s55 = sld [smem:[#allocation3 + %s54]]
    %s56 = scalar_lea.vmem [#allocation4], %s55
    %v57 = vld [vmem:[%s56] sm:$0x1]
    %58 = vst [vmem:[#allocation7 + $0x4] sm:$0x1] %v57
    %s59 = sadd.s32 %s34, 5
    %s60 = sld [smem:[#allocation3 + %s59]]
    %s61 = scalar_lea.vmem [#allocation4], %s60
    %v62 = vld [vmem:[%s61] sm:$0x1]
    %63 = vst [vmem:[#allocation7 + $0x5] sm:$0x1] %v62
    %s64 = sadd.s32 %s34, 6
    %s65 = sld [smem:[#allocation3 + %s64]]
    %s66 = scalar_lea.vmem [#allocation4], %s65
    %v67 = vld [vmem:[%s66] sm:$0x1]
    %68 = vst [vmem:[#allocation7 + $0x6] sm:$0x1] %v67
    %s69 = sadd.s32 %s34, 7
    %s70 = sld [smem:[#allocation3 + %s69]]
    %s71 = scalar_lea.vmem [#allocation4], %s70
    %v72 = vld [vmem:[%s71] sm:$0x1]
    %73 = vst [vmem:[#allocation7 + $0x7] sm:$0x1] %v72
    %s74 = sadd.s32 %s34, 8
    %s75 = sld [smem:[#allocation3 + %s74]]
    %s76 = scalar_lea.vmem [#allocation4], %s75
    %v77 = vld [vmem:[%s76] sm:$0x1]
    %78 = vst [vmem:[#allocation7 + $0x8] sm:$0x1] %v77
    %s79 = sadd.s32 %s34, 9
    %s80 = sld [smem:[#allocation3 + %s79]]
    %s81 = scalar_lea.vmem [#allocation4], %s80
    %v82 = vld [vmem:[%s81] sm:$0x1]
    %83 = vst [vmem:[#allocation7 + $0x9] sm:$0x1] %v82
    %s84 = sadd.s32 %s34, 10
    %s85 = sld [smem:[#allocation3 + %s84]]
    %s86 = scalar_lea.vmem [#allocation4], %s85
    %v87 = vld [vmem:[%s86] sm:$0x1]
    %88 = vst [vmem:[#allocation7 + $0xa] sm:$0x1] %v87
    %s89 = sadd.s32 %s34, 11
    %s90 = sld [smem:[#allocation3 + %s89]]
    %s91 = scalar_lea.vmem [#allocation4], %s90
    %v92 = vld [vmem:[%s91] sm:$0x1]
    %93 = vst [vmem:[#allocation7 + $0xb] sm:$0x1] %v92
    %s94 = sadd.s32 %s34, 12
    %s95 = sld [smem:[#allocation3 + %s94]]
    %s96 = scalar_lea.vmem [#allocation4], %s95
    %v97 = vld [vmem:[%s96] sm:$0x1]
    %98 = vst [vmem:[#allocation7 + $0xc] sm:$0x1] %v97
    %s99 = sadd.s32 %s34, 13
    %s100 = sld [smem:[#allocation3 + %s99]]
    %s101 = scalar_lea.vmem [#allocation4], %s100
    %v102 = vld [vmem:[%s101] sm:$0x1]
    %103 = vst [vmem:[#allocation7 + $0xd] sm:$0x1] %v102
    %s104 = sadd.s32 %s34, 14
    %s105 = sld [smem:[#allocation3 + %s104]]
    %s106 = scalar_lea.vmem [#allocation4], %s105
    %v107 = vld [vmem:[%s106] sm:$0x1]
    %108 = vst [vmem:[#allocation7 + $0xe] sm:$0x1] %v107
    %s109 = sadd.s32 %s34, 15
    %s110 = sld [smem:[#allocation3 + %s109]]
    %s111 = scalar_lea.vmem [#allocation4], %s110
    %v112 = vld [vmem:[%s111] sm:$0x1]
    %113 = vst [vmem:[#allocation7 + $0xf] sm:$0x1] %v112
    %s114 = sadd.s32 %s34, 16
    %s115 = sld [smem:[#allocation3 + %s114]]
    %s116 = scalar_lea.vmem [#allocation4], %s115
    %v117 = vld [vmem:[%s116] sm:$0x1]
    %118 = vst [vmem:[#allocation7 + $0x10] sm:$0x1] %v117
    %s119 = sadd.s32 %s34, 17
    %s120 = sld [smem:[#allocation3 + %s119]]
    %s121 = scalar_lea.vmem [#allocation4], %s120
    %v122 = vld [vmem:[%s121] sm:$0x1]
    %123 = vst [vmem:[#allocation7 + $0x11] sm:$0x1] %v122
    %s124 = sadd.s32 %s34, 18
    %s125 = sld [smem:[#allocation3 + %s124]]
    %s126 = scalar_lea.vmem [#allocation4], %s125
    %v127 = vld [vmem:[%s126] sm:$0x1]
    %128 = vst [vmem:[#allocation7 + $0x12] sm:$0x1] %v127
    %s129 = sadd.s32 %s34, 19
    %s130 = sld [smem:[#allocation3 + %s129]]
    %s131 = scalar_lea.vmem [#allocation4], %s130
    %v132 = vld [vmem:[%s131] sm:$0x1]
    %133 = vst [vmem:[#allocation7 + $0x13] sm:$0x1] %v132
    %s134 = sadd.s32 %s34, 20
    %s135 = sld [smem:[#allocation3 + %s134]]
    %s136 = scalar_lea.vmem [#allocation4], %s135
    %v137 = vld [vmem:[%s136] sm:$0x1]
    %138 = vst [vmem:[#allocation7 + $0x14] sm:$0x1] %v137
    %s139 = sadd.s32 %s34, 21
    %s140 = sld [smem:[#allocation3 + %s139]]
    %s141 = scalar_lea.vmem [#allocation4], %s140
    %v142 = vld [vmem:[%s141] sm:$0x1]
    %143 = vst [vmem:[#allocation7 + $0x15] sm:$0x1] %v142
    %s144 = sadd.s32 %s34, 22
    %s145 = sld [smem:[#allocation3 + %s144]]
    %s146 = scalar_lea.vmem [#allocation4], %s145
    %v147 = vld [vmem:[%s146] sm:$0x1]
    %148 = vst [vmem:[#allocation7 + $0x16] sm:$0x1] %v147
    %s149 = sadd.s32 %s34, 23
    %s150 = sld [smem:[#allocation3 + %s149]]
    %s151 = scalar_lea.vmem [#allocation4], %s150
    %v152 = vld [vmem:[%s151] sm:$0x1]
    %153 = vst [vmem:[#allocation7 + $0x17] sm:$0x1] %v152
    %s154 = sadd.s32 %s34, 24
    %s155 = sld [smem:[#allocation3 + %s154]]
    %s156 = scalar_lea.vmem [#allocation4], %s155
    %v157 = vld [vmem:[%s156] sm:$0x1]
    %158 = vst [vmem:[#allocation7 + $0x18] sm:$0x1] %v157
    %s159 = sadd.s32 %s34, 25
    %s160 = sld [smem:[#allocation3 + %s159]]
    %s161 = scalar_lea.vmem [#allocation4], %s160
    %v162 = vld [vmem:[%s161] sm:$0x1]
    %163 = vst [vmem:[#allocation7 + $0x19] sm:$0x1] %v162
    %s164 = sadd.s32 %s34, 26
    %s165 = sld [smem:[#allocation3 + %s164]]
    %s166 = scalar_lea.vmem [#allocation4], %s165
    %v167 = vld [vmem:[%s166] sm:$0x1]
    %168 = vst [vmem:[#allocation7 + $0x1a] sm:$0x1] %v167
    %s169 = sadd.s32 %s34, 27
    %s170 = sld [smem:[#allocation3 + %s169]]
    %s171 = scalar_lea.vmem [#allocation4], %s170
    %v172 = vld [vmem:[%s171] sm:$0x1]
    %173 = vst [vmem:[#allocation7 + $0x1b] sm:$0x1] %v172
    %s174 = sadd.s32 %s34, 28
    %s175 = sld [smem:[#allocation3 + %s174]]
    %s176 = scalar_lea.vmem [#allocation4], %s175
    %v177 = vld [vmem:[%s176] sm:$0x1]
    %178 = vst [vmem:[#allocation7 + $0x1c] sm:$0x1] %v177
    %s179 = sadd.s32 %s34, 29
    %s180 = sld [smem:[#allocation3 + %s179]]
    %s181 = scalar_lea.vmem [#allocation4], %s180
    %v182 = vld [vmem:[%s181] sm:$0x1]
    %183 = vst [vmem:[#allocation7 + $0x1d] sm:$0x1] %v182
    %s184 = sadd.s32 %s34, 30
    %s185 = sld [smem:[#allocation3 + %s184]]
    %s186 = scalar_lea.vmem [#allocation4], %s185
    %v187 = vld [vmem:[%s186] sm:$0x1]
    %188 = vst [vmem:[#allocation7 + $0x1e] sm:$0x1] %v187
    %s189 = sadd.s32 %s34, 31
    %s190 = sld [smem:[#allocation3 + %s189]]
    %s191 = scalar_lea.vmem [#allocation4], %s190
    %v192 = vld [vmem:[%s191] sm:$0x1]
    %193 = vst [vmem:[#allocation7 + $0x1f] sm:$0x1] %v192
    %s194 = sadd.s32 %s34, 32
    %s195 = sld [smem:[#allocation3 + %s194]]
    %s196 = scalar_lea.vmem [#allocation4], %s195
    %v197 = vld [vmem:[%s196] sm:$0x1]
    %198 = vst [vmem:[#allocation7 + $0x20] sm:$0x1] %v197
    %s199 = sadd.s32 %s34, 33
    %s200 = sld [smem:[#allocation3 + %s199]]
    %s201 = scalar_lea.vmem [#allocation4], %s200
    %v202 = vld [vmem:[%s201] sm:$0x1]
    %203 = vst [vmem:[#allocation7 + $0x21] sm:$0x1] %v202
    %s204 = sadd.s32 %s34, 34
    %s205 = sld [smem:[#allocation3 + %s204]]
    %s206 = scalar_lea.vmem [#allocation4], %s205
    %v207 = vld [vmem:[%s206] sm:$0x1]
    %208 = vst [vmem:[#allocation7 + $0x22] sm:$0x1] %v207
    %s209 = sadd.s32 %s34, 35
    %s210 = sld [smem:[#allocation3 + %s209]]
    %s211 = scalar_lea.vmem [#allocation4], %s210
    %v212 = vld [vmem:[%s211] sm:$0x1]
    %213 = vst [vmem:[#allocation7 + $0x23] sm:$0x1] %v212
    %s214 = sadd.s32 %s34, 36
    %s215 = sld [smem:[#allocation3 + %s214]]
    %s216 = scalar_lea.vmem [#allocation4], %s215
    %v217 = vld [vmem:[%s216] sm:$0x1]
    %218 = vst [vmem:[#allocation7 + $0x24] sm:$0x1] %v217
    %s219 = sadd.s32 %s34, 37
    %s220 = sld [smem:[#allocation3 + %s219]]
    %s221 = scalar_lea.vmem [#allocation4], %s220
    %v222 = vld [vmem:[%s221] sm:$0x1]
    %223 = vst [vmem:[#allocation7 + $0x25] sm:$0x1] %v222
    %s224 = sadd.s32 %s34, 38
    %s225 = sld [smem:[#allocation3 + %s224]]
    %s226 = scalar_lea.vmem [#allocation4], %s225
    %v227 = vld [vmem:[%s226] sm:$0x1]
    %228 = vst [vmem:[#allocation7 + $0x26] sm:$0x1] %v227
    %s229 = sadd.s32 %s34, 39
    %s230 = sld [smem:[#allocation3 + %s229]]
    %s231 = scalar_lea.vmem [#allocation4], %s230
    %v232 = vld [vmem:[%s231] sm:$0x1]
    %233 = vst [vmem:[#allocation7 + $0x27] sm:$0x1] %v232
    %s234 = sadd.s32 %s34, 40
    %s235 = sld [smem:[#allocation3 + %s234]]
    %s236 = scalar_lea.vmem [#allocation4], %s235
    %v237 = vld [vmem:[%s236] sm:$0x1]
    %238 = vst [vmem:[#allocation7 + $0x28] sm:$0x1] %v237
    %s239 = sadd.s32 %s34, 41
    %s240 = sld [smem:[#allocation3 + %s239]]
    %s241 = scalar_lea.vmem [#allocation4], %s240
    %v242 = vld [vmem:[%s241] sm:$0x1]
    %243 = vst [vmem:[#allocation7 + $0x29] sm:$0x1] %v242
    %s244 = sadd.s32 %s34, 42
    %s245 = sld [smem:[#allocation3 + %s244]]
    %s246 = scalar_lea.vmem [#allocation4], %s245
    %v247 = vld [vmem:[%s246] sm:$0x1]
    %248 = vst [vmem:[#allocation7 + $0x2a] sm:$0x1] %v247
    %s249 = sadd.s32 %s34, 43
    %s250 = sld [smem:[#allocation3 + %s249]]
    %s251 = scalar_lea.vmem [#allocation4], %s250
    %v252 = vld [vmem:[%s251] sm:$0x1]
    %253 = vst [vmem:[#allocation7 + $0x2b] sm:$0x1] %v252
    %s254 = sadd.s32 %s34, 44
    %s255 = sld [smem:[#allocation3 + %s254]]
    %s256 = scalar_lea.vmem [#allocation4], %s255
    %v257 = vld [vmem:[%s256] sm:$0x1]
    %258 = vst [vmem:[#allocation7 + $0x2c] sm:$0x1] %v257
    %s259 = sadd.s32 %s34, 45
    %s260 = sld [smem:[#allocation3 + %s259]]
    %s261 = scalar_lea.vmem [#allocation4], %s260
    %v262 = vld [vmem:[%s261] sm:$0x1]
    %263 = vst [vmem:[#allocation7 + $0x2d] sm:$0x1] %v262
    %s264 = sadd.s32 %s34, 46
    %s265 = sld [smem:[#allocation3 + %s264]]
    %s266 = scalar_lea.vmem [#allocation4], %s265
    %v267 = vld [vmem:[%s266] sm:$0x1]
    %268 = vst [vmem:[#allocation7 + $0x2e] sm:$0x1] %v267
    %s269 = sadd.s32 %s34, 47
    %s270 = sld [smem:[#allocation3 + %s269]]
    %s271 = scalar_lea.vmem [#allocation4], %s270
    %v272 = vld [vmem:[%s271] sm:$0x1]
    %273 = vst [vmem:[#allocation7 + $0x2f] sm:$0x1] %v272
    %s274 = sadd.s32 %s34, 48
    %s275 = sld [smem:[#allocation3 + %s274]]
    %s276 = scalar_lea.vmem [#allocation4], %s275
    %v277 = vld [vmem:[%s276] sm:$0x1]
    %278 = vst [vmem:[#allocation7 + $0x30] sm:$0x1] %v277
    %s279 = sadd.s32 %s34, 49
    %s280 = sld [smem:[#allocation3 + %s279]]
    %s281 = scalar_lea.vmem [#allocation4], %s280
    %v282 = vld [vmem:[%s281] sm:$0x1]
    %283 = vst [vmem:[#allocation7 + $0x31] sm:$0x1] %v282
    %s284 = sadd.s32 %s34, 50
    %s285 = sld [smem:[#allocation3 + %s284]]
    %s286 = scalar_lea.vmem [#allocation4], %s285
    %v287 = vld [vmem:[%s286] sm:$0x1]
    %288 = vst [vmem:[#allocation7 + $0x32] sm:$0x1] %v287
    %s289 = sadd.s32 %s34, 51
    %s290 = sld [smem:[#allocation3 + %s289]]
    %s291 = scalar_lea.vmem [#allocation4], %s290
    %v292 = vld [vmem:[%s291] sm:$0x1]
    %293 = vst [vmem:[#allocation7 + $0x33] sm:$0x1] %v292
    %s294 = sadd.s32 %s34, 52
    %s295 = sld [smem:[#allocation3 + %s294]]
    %s296 = scalar_lea.vmem [#allocation4], %s295
    %v297 = vld [vmem:[%s296] sm:$0x1]
    %298 = vst [vmem:[#allocation7 + $0x34] sm:$0x1] %v297
    %s299 = sadd.s32 %s34, 53
    %s300 = sld [smem:[#allocation3 + %s299]]
    %s301 = scalar_lea.vmem [#allocation4], %s300
    %v302 = vld [vmem:[%s301] sm:$0x1]
    %303 = vst [vmem:[#allocation7 + $0x35] sm:$0x1] %v302
    %s304 = sadd.s32 %s34, 54
    %s305 = sld [smem:[#allocation3 + %s304]]
    %s306 = scalar_lea.vmem [#allocation4], %s305
    %v307 = vld [vmem:[%s306] sm:$0x1]
    %308 = vst [vmem:[#allocation7 + $0x36] sm:$0x1] %v307
    %s309 = sadd.s32 %s34, 55
    %s310 = sld [smem:[#allocation3 + %s309]]
    %s311 = scalar_lea.vmem [#allocation4], %s310
    %v312 = vld [vmem:[%s311] sm:$0x1]
    %313 = vst [vmem:[#allocation7 + $0x37] sm:$0x1] %v312
    %s314 = sadd.s32 %s34, 56
    %s315 = sld [smem:[#allocation3 + %s314]]
    %s316 = scalar_lea.vmem [#allocation4], %s315
    %v317 = vld [vmem:[%s316] sm:$0x1]
    %318 = vst [vmem:[#allocation7 + $0x38] sm:$0x1] %v317
    %s319 = sadd.s32 %s34, 57
    %s320 = sld [smem:[#allocation3 + %s319]]
    %s321 = scalar_lea.vmem [#allocation4], %s320
    %v322 = vld [vmem:[%s321] sm:$0x1]
    %323 = vst [vmem:[#allocation7 + $0x39] sm:$0x1] %v322
    %s324 = sadd.s32 %s34, 58
    %s325 = sld [smem:[#allocation3 + %s324]]
    %s326 = scalar_lea.vmem [#allocation4], %s325
    %v327 = vld [vmem:[%s326] sm:$0x1]
    %328 = vst [vmem:[#allocation7 + $0x3a] sm:$0x1] %v327
    %s329 = sadd.s32 %s34, 59
    %s330 = sld [smem:[#allocation3 + %s329]]
    %s331 = scalar_lea.vmem [#allocation4], %s330
    %v332 = vld [vmem:[%s331] sm:$0x1]
    %333 = vst [vmem:[#allocation7 + $0x3b] sm:$0x1] %v332
    %s334 = sadd.s32 %s34, 60
    %s335 = sld [smem:[#allocation3 + %s334]]
    %s336 = scalar_lea.vmem [#allocation4], %s335
    %v337 = vld [vmem:[%s336] sm:$0x1]
    %338 = vst [vmem:[#allocation7 + $0x3c] sm:$0x1] %v337
    %s339 = sadd.s32 %s34, 61
    %s340 = sld [smem:[#allocation3 + %s339]]
    %s341 = scalar_lea.vmem [#allocation4], %s340
    %v342 = vld [vmem:[%s341] sm:$0x1]
    %343 = vst [vmem:[#allocation7 + $0x3d] sm:$0x1] %v342
    %s344 = sadd.s32 %s34, 62
    %s345 = sld [smem:[#allocation3 + %s344]]
    %s346 = scalar_lea.vmem [#allocation4], %s345
    %v347 = vld [vmem:[%s346] sm:$0x1]
    %348 = vst [vmem:[#allocation7 + $0x3e] sm:$0x1] %v347
    %s349 = sadd.s32 %s34, 63
    %s350 = sld [smem:[#allocation3 + %s349]]
    %s351 = scalar_lea.vmem [#allocation4], %s350
    %v352 = vld [vmem:[%s351] sm:$0x1]
    %353 = vst [vmem:[#allocation7 + $0x3f] sm:$0x1] %v352
    %s354 = sadd.s32 %s34, 64
    %s355 = sld [smem:[#allocation3 + %s354]]
    %s356 = scalar_lea.vmem [#allocation4], %s355
    %v357 = vld [vmem:[%s356] sm:$0x1]
    %358 = vst [vmem:[#allocation7 + $0x40] sm:$0x1] %v357
    %s359 = sadd.s32 %s34, 65
    %s360 = sld [smem:[#allocation3 + %s359]]
    %s361 = scalar_lea.vmem [#allocation4], %s360
    %v362 = vld [vmem:[%s361] sm:$0x1]
    %363 = vst [vmem:[#allocation7 + $0x41] sm:$0x1] %v362
    %s364 = sadd.s32 %s34, 66
    %s365 = sld [smem:[#allocation3 + %s364]]
    %s366 = scalar_lea.vmem [#allocation4], %s365
    %v367 = vld [vmem:[%s366] sm:$0x1]
    %368 = vst [vmem:[#allocation7 + $0x42] sm:$0x1] %v367
    %s369 = sadd.s32 %s34, 67
    %s370 = sld [smem:[#allocation3 + %s369]]
    %s371 = scalar_lea.vmem [#allocation4], %s370
    %v372 = vld [vmem:[%s371] sm:$0x1]
    %373 = vst [vmem:[#allocation7 + $0x43] sm:$0x1] %v372
    %s374 = sadd.s32 %s34, 68
    %s375 = sld [smem:[#allocation3 + %s374]]
    %s376 = scalar_lea.vmem [#allocation4], %s375
    %v377 = vld [vmem:[%s376] sm:$0x1]
    %378 = vst [vmem:[#allocation7 + $0x44] sm:$0x1] %v377
    %s379 = sadd.s32 %s34, 69
    %s380 = sld [smem:[#allocation3 + %s379]]
    %s381 = scalar_lea.vmem [#allocation4], %s380
    %v382 = vld [vmem:[%s381] sm:$0x1]
    %383 = vst [vmem:[#allocation7 + $0x45] sm:$0x1] %v382
    %s384 = sadd.s32 %s34, 70
    %s385 = sld [smem:[#allocation3 + %s384]]
    %s386 = scalar_lea.vmem [#allocation4], %s385
    %v387 = vld [vmem:[%s386] sm:$0x1]
    %388 = vst [vmem:[#allocation7 + $0x46] sm:$0x1] %v387
    %s389 = sadd.s32 %s34, 71
    %s390 = sld [smem:[#allocation3 + %s389]]
    %s391 = scalar_lea.vmem [#allocation4], %s390
    %v392 = vld [vmem:[%s391] sm:$0x1]
    %393 = vst [vmem:[#allocation7 + $0x47] sm:$0x1] %v392
    %s394 = sadd.s32 %s34, 72
    %s395 = sld [smem:[#allocation3 + %s394]]
    %s396 = scalar_lea.vmem [#allocation4], %s395
    %v397 = vld [vmem:[%s396] sm:$0x1]
    %398 = vst [vmem:[#allocation7 + $0x48] sm:$0x1] %v397
    %s399 = sadd.s32 %s34, 73
    %s400 = sld [smem:[#allocation3 + %s399]]
    %s401 = scalar_lea.vmem [#allocation4], %s400
    %v402 = vld [vmem:[%s401] sm:$0x1]
    %403 = vst [vmem:[#allocation7 + $0x49] sm:$0x1] %v402
    %s404 = sadd.s32 %s34, 74
    %s405 = sld [smem:[#allocation3 + %s404]]
    %s406 = scalar_lea.vmem [#allocation4], %s405
    %v407 = vld [vmem:[%s406] sm:$0x1]
    %408 = vst [vmem:[#allocation7 + $0x4a] sm:$0x1] %v407
    %s409 = sadd.s32 %s34, 75
    %s410 = sld [smem:[#allocation3 + %s409]]
    %s411 = scalar_lea.vmem [#allocation4], %s410
    %v412 = vld [vmem:[%s411] sm:$0x1]
    %413 = vst [vmem:[#allocation7 + $0x4b] sm:$0x1] %v412
    %s414 = sadd.s32 %s34, 76
    %s415 = sld [smem:[#allocation3 + %s414]]
    %s416 = scalar_lea.vmem [#allocation4], %s415
    %v417 = vld [vmem:[%s416] sm:$0x1]
    %418 = vst [vmem:[#allocation7 + $0x4c] sm:$0x1] %v417
    %s419 = sadd.s32 %s34, 77
    %s420 = sld [smem:[#allocation3 + %s419]]
    %s421 = scalar_lea.vmem [#allocation4], %s420
    %v422 = vld [vmem:[%s421] sm:$0x1]
    %423 = vst [vmem:[#allocation7 + $0x4d] sm:$0x1] %v422
    %s424 = sadd.s32 %s34, 78
    %s425 = sld [smem:[#allocation3 + %s424]]
    %s426 = scalar_lea.vmem [#allocation4], %s425
    %v427 = vld [vmem:[%s426] sm:$0x1]
    %428 = vst [vmem:[#allocation7 + $0x4e] sm:$0x1] %v427
    %s429 = sadd.s32 %s34, 79
    %s430 = sld [smem:[#allocation3 + %s429]]
    %s431 = scalar_lea.vmem [#allocation4], %s430
    %v432 = vld [vmem:[%s431] sm:$0x1]
    %433 = vst [vmem:[#allocation7 + $0x4f] sm:$0x1] %v432
    %s434 = sadd.s32 %s34, 80
    %s435 = sld [smem:[#allocation3 + %s434]]
    %s436 = scalar_lea.vmem [#allocation4], %s435
    %v437 = vld [vmem:[%s436] sm:$0x1]
    %438 = vst [vmem:[#allocation7 + $0x50] sm:$0x1] %v437
    %s439 = sadd.s32 %s34, 81
    %s440 = sld [smem:[#allocation3 + %s439]]
    %s441 = scalar_lea.vmem [#allocation4], %s440
    %v442 = vld [vmem:[%s441] sm:$0x1]
    %443 = vst [vmem:[#allocation7 + $0x51] sm:$0x1] %v442
    %s444 = sadd.s32 %s34, 82
    %s445 = sld [smem:[#allocation3 + %s444]]
    %s446 = scalar_lea.vmem [#allocation4], %s445
    %v447 = vld [vmem:[%s446] sm:$0x1]
    %448 = vst [vmem:[#allocation7 + $0x52] sm:$0x1] %v447
    %s449 = sadd.s32 %s34, 83
    %s450 = sld [smem:[#allocation3 + %s449]]
    %s451 = scalar_lea.vmem [#allocation4], %s450
    %v452 = vld [vmem:[%s451] sm:$0x1]
    %453 = vst [vmem:[#allocation7 + $0x53] sm:$0x1] %v452
    %s454 = sadd.s32 %s34, 84
    %s455 = sld [smem:[#allocation3 + %s454]]
    %s456 = scalar_lea.vmem [#allocation4], %s455
    %v457 = vld [vmem:[%s456] sm:$0x1]
    %458 = vst [vmem:[#allocation7 + $0x54] sm:$0x1] %v457
    %s459 = sadd.s32 %s34, 85
    %s460 = sld [smem:[#allocation3 + %s459]]
    %s461 = scalar_lea.vmem [#allocation4], %s460
    %v462 = vld [vmem:[%s461] sm:$0x1]
    %463 = vst [vmem:[#allocation7 + $0x55] sm:$0x1] %v462
    %s464 = sadd.s32 %s34, 86
    %s465 = sld [smem:[#allocation3 + %s464]]
    %s466 = scalar_lea.vmem [#allocation4], %s465
    %v467 = vld [vmem:[%s466] sm:$0x1]
    %468 = vst [vmem:[#allocation7 + $0x56] sm:$0x1] %v467
    %s469 = sadd.s32 %s34, 87
    %s470 = sld [smem:[#allocation3 + %s469]]
    %s471 = scalar_lea.vmem [#allocation4], %s470
    %v472 = vld [vmem:[%s471] sm:$0x1]
    %473 = vst [vmem:[#allocation7 + $0x57] sm:$0x1] %v472
    %s474 = sadd.s32 %s34, 88
    %s475 = sld [smem:[#allocation3 + %s474]]
    %s476 = scalar_lea.vmem [#allocation4], %s475
    %v477 = vld [vmem:[%s476] sm:$0x1]
    %478 = vst [vmem:[#allocation7 + $0x58] sm:$0x1] %v477
    %s479 = sadd.s32 %s34, 89
    %s480 = sld [smem:[#allocation3 + %s479]]
    %s481 = scalar_lea.vmem [#allocation4], %s480
    %v482 = vld [vmem:[%s481] sm:$0x1]
    %483 = vst [vmem:[#allocation7 + $0x59] sm:$0x1] %v482
    %s484 = sadd.s32 %s34, 90
    %s485 = sld [smem:[#allocation3 + %s484]]
    %s486 = scalar_lea.vmem [#allocation4], %s485
    %v487 = vld [vmem:[%s486] sm:$0x1]
    %488 = vst [vmem:[#allocation7 + $0x5a] sm:$0x1] %v487
    %s489 = sadd.s32 %s34, 91
    %s490 = sld [smem:[#allocation3 + %s489]]
    %s491 = scalar_lea.vmem [#allocation4], %s490
    %v492 = vld [vmem:[%s491] sm:$0x1]
    %493 = vst [vmem:[#allocation7 + $0x5b] sm:$0x1] %v492
    %s494 = sadd.s32 %s34, 92
    %s495 = sld [smem:[#allocation3 + %s494]]
    %s496 = scalar_lea.vmem [#allocation4], %s495
    %v497 = vld [vmem:[%s496] sm:$0x1]
    %498 = vst [vmem:[#allocation7 + $0x5c] sm:$0x1] %v497
    %s499 = sadd.s32 %s34, 93
    %s500 = sld [smem:[#allocation3 + %s499]]
    %s501 = scalar_lea.vmem [#allocation4], %s500
    %v502 = vld [vmem:[%s501] sm:$0x1]
    %503 = vst [vmem:[#allocation7 + $0x5d] sm:$0x1] %v502
    %s504 = sadd.s32 %s34, 94
    %s505 = sld [smem:[#allocation3 + %s504]]
    %s506 = scalar_lea.vmem [#allocation4], %s505
    %v507 = vld [vmem:[%s506] sm:$0x1]
    %508 = vst [vmem:[#allocation7 + $0x5e] sm:$0x1] %v507
    %s509 = sadd.s32 %s34, 95
    %s510 = sld [smem:[#allocation3 + %s509]]
    %s511 = scalar_lea.vmem [#allocation4], %s510
    %v512 = vld [vmem:[%s511] sm:$0x1]
    %513 = vst [vmem:[#allocation7 + $0x5f] sm:$0x1] %v512
    %s514 = sadd.s32 %s34, 96
    %s515 = sld [smem:[#allocation3 + %s514]]
    %s516 = scalar_lea.vmem [#allocation4], %s515
    %v517 = vld [vmem:[%s516] sm:$0x1]
    %518 = vst [vmem:[#allocation7 + $0x60] sm:$0x1] %v517
    %s519 = sadd.s32 %s34, 97
    %s520 = sld [smem:[#allocation3 + %s519]]
    %s521 = scalar_lea.vmem [#allocation4], %s520
    %v522 = vld [vmem:[%s521] sm:$0x1]
    %523 = vst [vmem:[#allocation7 + $0x61] sm:$0x1] %v522
    %s524 = sadd.s32 %s34, 98
    %s525 = sld [smem:[#allocation3 + %s524]]
    %s526 = scalar_lea.vmem [#allocation4], %s525
    %v527 = vld [vmem:[%s526] sm:$0x1]
    %528 = vst [vmem:[#allocation7 + $0x62] sm:$0x1] %v527
    %s529 = sadd.s32 %s34, 99
    %s530 = sld [smem:[#allocation3 + %s529]]
    %s531 = scalar_lea.vmem [#allocation4], %s530
    %v532 = vld [vmem:[%s531] sm:$0x1]
    %533 = vst [vmem:[#allocation7 + $0x63] sm:$0x1] %v532
    %s534 = sadd.s32 %s34, 100
    %s535 = sld [smem:[#allocation3 + %s534]]
    %s536 = scalar_lea.vmem [#allocation4], %s535
    %v537 = vld [vmem:[%s536] sm:$0x1]
    %538 = vst [vmem:[#allocation7 + $0x64] sm:$0x1] %v537
    %s539 = sadd.s32 %s34, 101
    %s540 = sld [smem:[#allocation3 + %s539]]
    %s541 = scalar_lea.vmem [#allocation4], %s540
    %v542 = vld [vmem:[%s541] sm:$0x1]
    %543 = vst [vmem:[#allocation7 + $0x65] sm:$0x1] %v542
    %s544 = sadd.s32 %s34, 102
    %s545 = sld [smem:[#allocation3 + %s544]]
    %s546 = scalar_lea.vmem [#allocation4], %s545
    %v547 = vld [vmem:[%s546] sm:$0x1]
    %548 = vst [vmem:[#allocation7 + $0x66] sm:$0x1] %v547
    %s549 = sadd.s32 %s34, 103
    %s550 = sld [smem:[#allocation3 + %s549]]
    %s551 = scalar_lea.vmem [#allocation4], %s550
    %v552 = vld [vmem:[%s551] sm:$0x1]
    %553 = vst [vmem:[#allocation7 + $0x67] sm:$0x1] %v552
    %s554 = sadd.s32 %s34, 104
    %s555 = sld [smem:[#allocation3 + %s554]]
    %s556 = scalar_lea.vmem [#allocation4], %s555
    %v557 = vld [vmem:[%s556] sm:$0x1]
    %558 = vst [vmem:[#allocation7 + $0x68] sm:$0x1] %v557
    %s559 = sadd.s32 %s34, 105
    %s560 = sld [smem:[#allocation3 + %s559]]
    %s561 = scalar_lea.vmem [#allocation4], %s560
    %v562 = vld [vmem:[%s561] sm:$0x1]
    %563 = vst [vmem:[#allocation7 + $0x69] sm:$0x1] %v562
    %s564 = sadd.s32 %s34, 106
    %s565 = sld [smem:[#allocation3 + %s564]]
    %s566 = scalar_lea.vmem [#allocation4], %s565
    %v567 = vld [vmem:[%s566] sm:$0x1]
    %568 = vst [vmem:[#allocation7 + $0x6a] sm:$0x1] %v567
    %s569 = sadd.s32 %s34, 107
    %s570 = sld [smem:[#allocation3 + %s569]]
    %s571 = scalar_lea.vmem [#allocation4], %s570
    %v572 = vld [vmem:[%s571] sm:$0x1]
    %573 = vst [vmem:[#allocation7 + $0x6b] sm:$0x1] %v572
    %s574 = sadd.s32 %s34, 108
    %s575 = sld [smem:[#allocation3 + %s574]]
    %s576 = scalar_lea.vmem [#allocation4], %s575
    %v577 = vld [vmem:[%s576] sm:$0x1]
    %578 = vst [vmem:[#allocation7 + $0x6c] sm:$0x1] %v577
    %s579 = sadd.s32 %s34, 109
    %s580 = sld [smem:[#allocation3 + %s579]]
    %s581 = scalar_lea.vmem [#allocation4], %s580
    %v582 = vld [vmem:[%s581] sm:$0x1]
    %583 = vst [vmem:[#allocation7 + $0x6d] sm:$0x1] %v582
    %s584 = sadd.s32 %s34, 110
    %s585 = sld [smem:[#allocation3 + %s584]]
    %s586 = scalar_lea.vmem [#allocation4], %s585
    %v587 = vld [vmem:[%s586] sm:$0x1]
    %588 = vst [vmem:[#allocation7 + $0x6e] sm:$0x1] %v587
    %s589 = sadd.s32 %s34, 111
    %s590 = sld [smem:[#allocation3 + %s589]]
    %s591 = scalar_lea.vmem [#allocation4], %s590
    %v592 = vld [vmem:[%s591] sm:$0x1]
    %593 = vst [vmem:[#allocation7 + $0x6f] sm:$0x1] %v592
    %s594 = sadd.s32 %s34, 112
    %s595 = sld [smem:[#allocation3 + %s594]]
    %s596 = scalar_lea.vmem [#allocation4], %s595
    %v597 = vld [vmem:[%s596] sm:$0x1]
    %598 = vst [vmem:[#allocation7 + $0x70] sm:$0x1] %v597
    %s599 = sadd.s32 %s34, 113
    %s600 = sld [smem:[#allocation3 + %s599]]
    %s601 = scalar_lea.vmem [#allocation4], %s600
    %v602 = vld [vmem:[%s601] sm:$0x1]
    %603 = vst [vmem:[#allocation7 + $0x71] sm:$0x1] %v602
    %s604 = sadd.s32 %s34, 114
    %s605 = sld [smem:[#allocation3 + %s604]]
    %s606 = scalar_lea.vmem [#allocation4], %s605
    %v607 = vld [vmem:[%s606] sm:$0x1]
    %608 = vst [vmem:[#allocation7 + $0x72] sm:$0x1] %v607
    %s609 = sadd.s32 %s34, 115
    %s610 = sld [smem:[#allocation3 + %s609]]
    %s611 = scalar_lea.vmem [#allocation4], %s610
    %v612 = vld [vmem:[%s611] sm:$0x1]
    %613 = vst [vmem:[#allocation7 + $0x73] sm:$0x1] %v612
    %s614 = sadd.s32 %s34, 116
    %s615 = sld [smem:[#allocation3 + %s614]]
    %s616 = scalar_lea.vmem [#allocation4], %s615
    %v617 = vld [vmem:[%s616] sm:$0x1]
    %618 = vst [vmem:[#allocation7 + $0x74] sm:$0x1] %v617
    %s619 = sadd.s32 %s34, 117
    %s620 = sld [smem:[#allocation3 + %s619]]
    %s621 = scalar_lea.vmem [#allocation4], %s620
    %v622 = vld [vmem:[%s621] sm:$0x1]
    %623 = vst [vmem:[#allocation7 + $0x75] sm:$0x1] %v622
    %s624 = sadd.s32 %s34, 118
    %s625 = sld [smem:[#allocation3 + %s624]]
    %s626 = scalar_lea.vmem [#allocation4], %s625
    %v627 = vld [vmem:[%s626] sm:$0x1]
    %628 = vst [vmem:[#allocation7 + $0x76] sm:$0x1] %v627
    %s629 = sadd.s32 %s34, 119
    %s630 = sld [smem:[#allocation3 + %s629]]
    %s631 = scalar_lea.vmem [#allocation4], %s630
    %v632 = vld [vmem:[%s631] sm:$0x1]
    %633 = vst [vmem:[#allocation7 + $0x77] sm:$0x1] %v632
    %s634 = sadd.s32 %s34, 120
    %s635 = sld [smem:[#allocation3 + %s634]]
    %s636 = scalar_lea.vmem [#allocation4], %s635
    %v637 = vld [vmem:[%s636] sm:$0x1]
    %638 = vst [vmem:[#allocation7 + $0x78] sm:$0x1] %v637
    %s639 = sadd.s32 %s34, 121
    %s640 = sld [smem:[#allocation3 + %s639]]
    %s641 = scalar_lea.vmem [#allocation4], %s640
    %v642 = vld [vmem:[%s641] sm:$0x1]
    %643 = vst [vmem:[#allocation7 + $0x79] sm:$0x1] %v642
    %s644 = sadd.s32 %s34, 122
    %s645 = sld [smem:[#allocation3 + %s644]]
    %s646 = scalar_lea.vmem [#allocation4], %s645
    %v647 = vld [vmem:[%s646] sm:$0x1]
    %648 = vst [vmem:[#allocation7 + $0x7a] sm:$0x1] %v647
    %s649 = sadd.s32 %s34, 123
    %s650 = sld [smem:[#allocation3 + %s649]]
    %s651 = scalar_lea.vmem [#allocation4], %s650
    %v652 = vld [vmem:[%s651] sm:$0x1]
    %653 = vst [vmem:[#allocation7 + $0x7b] sm:$0x1] %v652
    %s654 = sadd.s32 %s34, 124
    %s655 = sld [smem:[#allocation3 + %s654]]
    %s656 = scalar_lea.vmem [#allocation4], %s655
    %v657 = vld [vmem:[%s656] sm:$0x1]
    %658 = vst [vmem:[#allocation7 + $0x7c] sm:$0x1] %v657
    %s659 = sadd.s32 %s34, 125
    %s660 = sld [smem:[#allocation3 + %s659]]
    %s661 = scalar_lea.vmem [#allocation4], %s660
    %v662 = vld [vmem:[%s661] sm:$0x1]
    %663 = vst [vmem:[#allocation7 + $0x7d] sm:$0x1] %v662
    %s664 = sadd.s32 %s34, 126
    %s665 = sld [smem:[#allocation3 + %s664]]
    %s666 = scalar_lea.vmem [#allocation4], %s665
    %v667 = vld [vmem:[%s666] sm:$0x1]
    %668 = vst [vmem:[#allocation7 + $0x7e] sm:$0x1] %v667
    %s669 = sadd.s32 %s34, 127
    %s670 = sld [smem:[#allocation3 + %s669]]
    %s671 = scalar_lea.vmem [#allocation4], %s670
    %v672 = vld [vmem:[%s671] sm:$0x1]
    %673 = vst [vmem:[#allocation7 + $0x7f] sm:$0x1] %v672
    // Predicated region
    $region10: #{tpu_custom_call.1} parent=1 // pred_check
      _
    $region11: #{tpu_custom_call.1} parent=1 // pred_check_branch
      %675 = sbr.rel (0) target = $region13
    $region12: #{tpu_custom_call.1} parent=1 // pred_region
      %677 = vsyncadd [#allocation6], 0
      %s678 = sshll.u32 [#allocation7], 4
      %s679 = int_to_ptr.vmem [resolvable:$true] %s678
      %s680 = sshll.u32 %s2, 4
      %s681 = int_to_ptr.hbm [resolvable:$true] %s680
      %686 = dma.vmem_to_hbm [thread:$0]  %s679, 2048, %s681, [#allocation6], 128, 128, 8
    $region13: #{tpu_custom_call.1} parent=1 // pred_fallthru
      _
    // Predicated region
    $region14: #{tpu_custom_call.1} parent=1 // pred_check
      _
    $region15: #{tpu_custom_call.1} parent=1 // pred_check_branch
      %688 = sbr.rel (0) target = $region17
    $region16: #{tpu_custom_call.1} parent=1 // pred_region
      %690 = dma.done [#allocation6], 2048
    $region17: #{tpu_custom_call.1} parent=1 // pred_fallthru
      _
    %691 = vsyncpa [#allocation5], 1
    %692 = vsyncpa [#allocation6], 1

</llo_original>
